<compile_context>
chip_gen: v7x
topology: tpu7x:2x2x1
jax: 0.10.0
libtpu: 0.0.40
codegen_flags: <defaults>
</compile_context>

<pallas_src>
import math
from functools import partial

import jax
import jax.numpy as jnp
from jax import lax
from jax.experimental import pallas as pl
from jax.experimental.pallas import tpu as pltpu


# ---------------------------------------------------------------------------
# Fused per-batch kernel: QKV projections + multi-head attention + output projection
# ---------------------------------------------------------------------------

def _fused_attn_layer_kernel(q_in_ref, k_in_ref, v_in_ref,
                             wq_ref, bq_ref, wk_ref, bk_ref, wv_ref, bv_ref,
                             wo_ref, bo_ref,
                             o_ref,
                             attn_ref, acc_ref,
                             *, n_heads, scale, mix):
    f32 = jnp.float32
    bf16 = jnp.bfloat16

    xq = q_in_ref[0].astype(bf16)   # (L, d_model)
    xk = k_in_ref[0].astype(bf16)   # (S, d_model)
    xv = v_in_ref[0].astype(bf16)   # (S, d_model)

    # Projections: bf16 MXU operands, f32 accumulation; weights stay VMEM-resident
    # across the whole grid (constant index_maps).
    q = jnp.dot(xq, wq_ref[...], preferred_element_type=f32) + bq_ref[...]   # (L, H*E) f32
    k = jnp.dot(xk, wk_ref[...], preferred_element_type=f32) + bk_ref[...]   # (S, H*E) f32
    v = jnp.dot(xv, wv_ref[...], preferred_element_type=f32) + bv_ref[...]   # (S, H*D) f32

    H = n_heads
    E = q.shape[-1] // H
    D = v.shape[-1] // H
    L = q.shape[0]

    # Fold the softmax scale into q (one pass over (L, H*E), not the (L, S) scores).
    q = q * scale

    qb = q.astype(bf16)
    kb = k.astype(bf16)
    vb = v.astype(bf16)

    contract_last = (((1,), (1,)), ((), ()))   # q @ k^T without materializing k.T

    if not mix:
        acc_ref[...] = jnp.zeros_like(acc_ref)

    for h in range(H):  # small static head loop
        qh = qb[:, h * E:(h + 1) * E]
        kh = kb[:, h * E:(h + 1) * E]
        vh = vb[:, h * D:(h + 1) * D]

        s = lax.dot_general(qh, kh, contract_last, preferred_element_type=f32)   # (L, S) f32
        m = jnp.max(s, axis=-1, keepdims=True)
        p = jnp.exp(s - m)
        denom = jnp.sum(p, axis=-1, keepdims=True)
        oh = jnp.dot(p.astype(bf16), vh, preferred_element_type=f32)             # (L, D) f32
        # Fold 1/denom into the (L, D) output; approx reciprocal runs on the EUP slot.
        oh = oh * pl.reciprocal(denom, approx=True)
        # NOTE: attention dropout (p=0.1) is identity in eval mode.

        if mix:
            # Store the head DIRECTLY (head-major rows) -- bounded live state.
            attn_ref[h * L:(h + 1) * L, :] = oh
        else:
            # mix=False: projection input row l is concat_h oh[l] -> clean per-head accumulate.
            acc_ref[...] += jnp.dot(oh.astype(bf16), wo_ref[h * D:(h + 1) * D, :],
                                    preferred_element_type=f32)

    if mix:
        # PyTorch mix=True: out = reshape(head-major (H, L, D), (L, H*D)) @ wo + bo.
        # Column chunk j of that mixed matrix is exactly rows j, j+H, ..., j+(L-1)*H of the
        # head-major scratch -> strided row slice, no reshape/relayout of values needed.
        acc_ref[...] = jnp.zeros_like(acc_ref)
        for j in range(H):
            mj = attn_ref[pl.ds(j, L, stride=H), :]                               # (L, D) f32
            acc_ref[...] += jnp.dot(mj.astype(bf16), wo_ref[j * D:(j + 1) * D, :],
                                    preferred_element_type=f32)

    o_ref[0] = (acc_ref[...] + bo_ref[...]).astype(o_ref.dtype)


# ---------------------------------------------------------------------------
# AttentionLayer (parameters + forward)
# ---------------------------------------------------------------------------

def init_attention_layer(key, d_model, n_heads, d_keys=None, d_values=None):
    d_keys = d_keys or d_model // n_heads
    d_values = d_values or d_model // n_heads
    ks = jax.random.split(key, 8)

    def lin_init(kw, kb, fan_in, fan_out):
        # PyTorch nn.Linear default: U(-1/sqrt(fan_in), 1/sqrt(fan_in))
        bound = 1.0 / math.sqrt(fan_in)
        w = jax.random.uniform(kw, (fan_in, fan_out), jnp.float32, -bound, bound)
        b = jax.random.uniform(kb, (fan_out,), jnp.float32, -bound, bound)
        return w, b

    return {
        "wq": lin_init(ks[0], ks[1], d_model, d_keys * n_heads),
        "wk": lin_init(ks[2], ks[3], d_model, d_keys * n_heads),
        "wv": lin_init(ks[4], ks[5], d_model, d_values * n_heads),
        "wo": lin_init(ks[6], ks[7], d_values * n_heads, d_model),
    }


def attention_layer_forward(params, queries, keys, values, n_heads, mix=True):
    B, L, dm = queries.shape
    _, S, _ = keys.shape
    H = n_heads
    wq, bq = params["wq"]
    wk, bk = params["wk"]
    wv, bv = params["wv"]
    wo, bo = params["wo"]
    HE = wq.shape[1]
    HD = wv.shape[1]
    E = HE // H
    D = HD // H
    d_out = wo.shape[1]
    scale = 1.0 / math.sqrt(E)   # FullAttention default scale

    # One-time wrapper cast: bf16 weights feed the MXU at full rate and halve resident VMEM.
    bf16 = jnp.bfloat16
    wq_b, wk_b, wv_b, wo_b = (w.astype(bf16) for w in (wq, wk, wv, wo))

    kernel = partial(_fused_attn_layer_kernel, n_heads=H, scale=scale, mix=mix)
    return pl.pallas_call(
        kernel,
        out_shape=jax.ShapeDtypeStruct((B, L, d_out), queries.dtype),
        grid=(B,),
        in_specs=[
            pl.BlockSpec((1, L, dm), lambda b: (b, 0, 0)),
            pl.BlockSpec((1, S, dm), lambda b: (b, 0, 0)),
            pl.BlockSpec((1, S, dm), lambda b: (b, 0, 0)),
            pl.BlockSpec((dm, HE), lambda b: (0, 0)),     # weights/biases: constant index map
            pl.BlockSpec((1, HE), lambda b: (0, 0)),      #  -> DMA'd once, VMEM-resident
            pl.BlockSpec((dm, HE), lambda b: (0, 0)),
            pl.BlockSpec((1, HE), lambda b: (0, 0)),
            pl.BlockSpec((dm, HD), lambda b: (0, 0)),
            pl.BlockSpec((1, HD), lambda b: (0, 0)),
            pl.BlockSpec((HD, d_out), lambda b: (0, 0)),
            pl.BlockSpec((1, d_out), lambda b: (0, 0)),
        ],
        out_specs=pl.BlockSpec((1, L, d_out), lambda b: (b, 0, 0)),
        scratch_shapes=[
            pltpu.VMEM((H * L, D), jnp.float32),   # head-major attention outputs
            pltpu.VMEM((L, d_out), jnp.float32),   # f32 accumulator for the output projection
        ],
        compiler_params=pltpu.CompilerParams(
            dimension_semantics=("parallel",),
            vmem_limit_bytes=32 * 1024 * 1024,     # raise v5e's 16 MiB default scoped limit
        ),
    )(queries, keys, values,
      wq_b, bq.reshape(1, HE), wk_b, bk.reshape(1, HE), wv_b, bv.reshape(1, HD),
      wo_b, bo.reshape(1, d_out))


# ---------------------------------------------------------------------------
# Pure-JAX reference (mirrors the PyTorch forward exactly, in f32) for verification
# ---------------------------------------------------------------------------

def reference_forward(params, queries, keys, values, n_heads, mix=True):
    B, L, _ = queries.shape
    _, S, _ = keys.shape
    H = n_heads
    wq, bq = params["wq"]
    wk, bk = params["wk"]
    wv, bv = params["wv"]
    wo, bo = params["wo"]

    q = (queries @ wq + bq).reshape(B, L, H, -1)
    k = (keys @ wk + bk).reshape(B, S, H, -1)
    v = (values @ wv + bv).reshape(B, S, H, -1)
    E = q.shape[-1]
    scale = 1.0 / math.sqrt(E)
    scores = jnp.einsum("blhe,bshe->bhls", q, k)
    A = jax.nn.softmax(scale * scores, axis=-1)
    V = jnp.einsum("bhls,bshd->blhd", A, v)  # (B, L, H, D)
    if mix:
        V = jnp.transpose(V, (0, 2, 1, 3))   # (B, H, L, D), then contiguous view(B, L, -1)
    out = V.reshape(B, L, -1)
    return out @ wo + bo


# ---------------------------------------------------------------------------
# Main
# ---------------------------------------------------------------------------

if __name__ == "__main__":
    B, L, S = 2, 8, 8
    d_model, n_heads = 32, 4

    key = jax.random.PRNGKey(0)
    kp, kq, kk, kv = jax.random.split(key, 4)

    params = init_attention_layer(kp, d_model, n_heads)
    queries = jax.random.normal(kq, (B, L, d_model), jnp.float32)
    keys = jax.random.normal(kk, (B, S, d_model), jnp.float32)
    values = jax.random.normal(kv, (B, S, d_model), jnp.float32)

    # mix=True (module default)
    out = attention_layer_forward(params, queries, keys, values, n_heads, mix=True)
    out = jax.block_until_ready(out)
    ref = reference_forward(params, queries, keys, values, n_heads, mix=True)
    assert out.shape == (B, L, d_model), out.shape
    # bf16 MXU operands -> ~1e-3-level deviation from the pure-f32 reference (review note).
    assert jnp.allclose(out, ref, atol=3e-2, rtol=3e-2), float(jnp.max(jnp.abs(out - ref)))

    # mix=False path (clean per-head accumulation into the output projection)
    out_nm = attention_layer_forward(params, queries, keys, values, n_heads, mix=False)
    out_nm = jax.block_until_ready(out_nm)
    ref_nm = reference_forward(params, queries, keys, values, n_heads, mix=False)
    assert jnp.allclose(out_nm, ref_nm, atol=3e-2, rtol=3e-2), \
        float(jnp.max(jnp.abs(out_nm - ref_nm)))

    print("KERNEL_OK")
</pallas_src>

<mosaic_0001>
module attributes {stable_mosaic.version = 11 : i64} {
  func.func @_fused_attn_layer_kernel(%arg0: i32, %arg1: memref<1x8x32xf32, #tpu.memory_space<vmem>>, %arg2: memref<1x8x32xf32, #tpu.memory_space<vmem>>, %arg3: memref<1x8x32xf32, #tpu.memory_space<vmem>>, %arg4: memref<32x32xbf16, #tpu.memory_space<vmem>>, %arg5: memref<1x32xf32, #tpu.memory_space<vmem>>, %arg6: memref<32x32xbf16, #tpu.memory_space<vmem>>, %arg7: memref<1x32xf32, #tpu.memory_space<vmem>>, %arg8: memref<32x32xbf16, #tpu.memory_space<vmem>>, %arg9: memref<1x32xf32, #tpu.memory_space<vmem>>, %arg10: memref<32x32xbf16, #tpu.memory_space<vmem>>, %arg11: memref<1x32xf32, #tpu.memory_space<vmem>>, %arg12: memref<1x8x32xf32, #tpu.memory_space<vmem>>, %arg13: memref<32x8xf32, #tpu.memory_space<vmem>>, %arg14: memref<8x32xf32, #tpu.memory_space<vmem>>) attributes {dimension_semantics = [#tpu.dimension_semantics<parallel>], iteration_bounds = array<i64: 2>, scalar_prefetch = 0 : i64, scratch_operands = 2 : i64, tpu.core_type = #tpu.core_type<tc>, window_params = [{transform_indices = @transform_0, window_bounds = array<i64: 1, 8, 32>}, {transform_indices = @transform_1, window_bounds = array<i64: 1, 8, 32>}, {transform_indices = @transform_2, window_bounds = array<i64: 1, 8, 32>}, {pipeline_mode = #tpu.pipeline_mode<synchronous>, transform_indices = @transform_3, window_bounds = array<i64: 32, 32>}, {pipeline_mode = #tpu.pipeline_mode<synchronous>, transform_indices = @transform_4, window_bounds = array<i64: 1, 32>}, {pipeline_mode = #tpu.pipeline_mode<synchronous>, transform_indices = @transform_5, window_bounds = array<i64: 32, 32>}, {pipeline_mode = #tpu.pipeline_mode<synchronous>, transform_indices = @transform_6, window_bounds = array<i64: 1, 32>}, {pipeline_mode = #tpu.pipeline_mode<synchronous>, transform_indices = @transform_7, window_bounds = array<i64: 32, 32>}, {pipeline_mode = #tpu.pipeline_mode<synchronous>, transform_indices = @transform_8, window_bounds = array<i64: 1, 32>}, {pipeline_mode = #tpu.pipeline_mode<synchronous>, transform_indices = @transform_9, window_bounds = array<i64: 32, 32>}, {pipeline_mode = #tpu.pipeline_mode<synchronous>, transform_indices = @transform_10, window_bounds = array<i64: 1, 32>}, {transform_indices = @transform_11, window_bounds = array<i64: 1, 8, 32>}]} {
    %c0 = arith.constant 0 : index
    %c0_0 = arith.constant 0 : index
    %c0_1 = arith.constant 0 : index
    %0 = vector.load %arg1[%c0, %c0_0, %c0_1] : memref<1x8x32xf32, #tpu.memory_space<vmem>>, vector<1x8x32xf32>
    %1 = vector.shape_cast %0 : vector<1x8x32xf32> to vector<8x32xf32>
    %2 = arith.truncf %1 : vector<8x32xf32> to vector<8x32xbf16>
    %c0_2 = arith.constant 0 : index
    %c0_3 = arith.constant 0 : index
    %c0_4 = arith.constant 0 : index
    %3 = vector.load %arg2[%c0_2, %c0_3, %c0_4] : memref<1x8x32xf32, #tpu.memory_space<vmem>>, vector<1x8x32xf32>
    %4 = vector.shape_cast %3 : vector<1x8x32xf32> to vector<8x32xf32>
    %5 = arith.truncf %4 : vector<8x32xf32> to vector<8x32xbf16>
    %c0_5 = arith.constant 0 : index
    %c0_6 = arith.constant 0 : index
    %c0_7 = arith.constant 0 : index
    %6 = vector.load %arg3[%c0_5, %c0_6, %c0_7] : memref<1x8x32xf32, #tpu.memory_space<vmem>>, vector<1x8x32xf32>
    %7 = vector.shape_cast %6 : vector<1x8x32xf32> to vector<8x32xf32>
    %8 = arith.truncf %7 : vector<8x32xf32> to vector<8x32xbf16>
    %c0_8 = arith.constant 0 : index
    %c0_9 = arith.constant 0 : index
    %9 = vector.load %arg4[%c0_8, %c0_9] : memref<32x32xbf16, #tpu.memory_space<vmem>>, vector<32x32xbf16>
    %cst = arith.constant dense<0.000000e+00> : vector<8x32xf32>
    %10 = tpu.matmul %2, %9, %cst {dimension_numbers = #tpu.dot_dimension_numbers<[1], [0], [0], [1], [0, 0, 1, 1], [], []>} : vector<8x32xbf16>, vector<32x32xbf16>, vector<8x32xf32> -> vector<8x32xf32>
    %c0_10 = arith.constant 0 : index
    %c0_11 = arith.constant 0 : index
    %11 = vector.load %arg5[%c0_10, %c0_11] : memref<1x32xf32, #tpu.memory_space<vmem>>, vector<1x32xf32>
    %12 = vector.broadcast %11 : vector<1x32xf32> to vector<8x32xf32>
    %13 = arith.addf %10, %12 : vector<8x32xf32>
    %c0_12 = arith.constant 0 : index
    %c0_13 = arith.constant 0 : index
    %14 = vector.load %arg6[%c0_12, %c0_13] : memref<32x32xbf16, #tpu.memory_space<vmem>>, vector<32x32xbf16>
    %cst_14 = arith.constant dense<0.000000e+00> : vector<8x32xf32>
    %15 = tpu.matmul %5, %14, %cst_14 {dimension_numbers = #tpu.dot_dimension_numbers<[1], [0], [0], [1], [0, 0, 1, 1], [], []>} : vector<8x32xbf16>, vector<32x32xbf16>, vector<8x32xf32> -> vector<8x32xf32>
    %c0_15 = arith.constant 0 : index
    %c0_16 = arith.constant 0 : index
    %16 = vector.load %arg7[%c0_15, %c0_16] : memref<1x32xf32, #tpu.memory_space<vmem>>, vector<1x32xf32>
    %17 = vector.broadcast %16 : vector<1x32xf32> to vector<8x32xf32>
    %18 = arith.addf %15, %17 : vector<8x32xf32>
    %c0_17 = arith.constant 0 : index
    %c0_18 = arith.constant 0 : index
    %19 = vector.load %arg8[%c0_17, %c0_18] : memref<32x32xbf16, #tpu.memory_space<vmem>>, vector<32x32xbf16>
    %cst_19 = arith.constant dense<0.000000e+00> : vector<8x32xf32>
    %20 = tpu.matmul %8, %19, %cst_19 {dimension_numbers = #tpu.dot_dimension_numbers<[1], [0], [0], [1], [0, 0, 1, 1], [], []>} : vector<8x32xbf16>, vector<32x32xbf16>, vector<8x32xf32> -> vector<8x32xf32>
    %c0_20 = arith.constant 0 : index
    %c0_21 = arith.constant 0 : index
    %21 = vector.load %arg9[%c0_20, %c0_21] : memref<1x32xf32, #tpu.memory_space<vmem>>, vector<1x32xf32>
    %22 = vector.broadcast %21 : vector<1x32xf32> to vector<8x32xf32>
    %23 = arith.addf %20, %22 : vector<8x32xf32>
    %cst_22 = arith.constant 0.353553385 : f32
    %24 = vector.broadcast %cst_22 : f32 to vector<8x32xf32>
    %25 = arith.mulf %13, %24 : vector<8x32xf32>
    %26 = arith.truncf %25 : vector<8x32xf32> to vector<8x32xbf16>
    %27 = arith.truncf %18 : vector<8x32xf32> to vector<8x32xbf16>
    %28 = arith.truncf %23 : vector<8x32xf32> to vector<8x32xbf16>
    %29 = vector.extract_strided_slice %26 {offsets = [0, 0], sizes = [8, 8], strides = [1, 1]} : vector<8x32xbf16> to vector<8x8xbf16>
    %30 = vector.extract_strided_slice %27 {offsets = [0, 0], sizes = [8, 8], strides = [1, 1]} : vector<8x32xbf16> to vector<8x8xbf16>
    %31 = vector.extract_strided_slice %28 {offsets = [0, 0], sizes = [8, 8], strides = [1, 1]} : vector<8x32xbf16> to vector<8x8xbf16>
    %cst_23 = arith.constant dense<0.000000e+00> : vector<8x8xf32>
    %32 = tpu.matmul %29, %30, %cst_23 {dimension_numbers = #tpu.dot_dimension_numbers<[1], [1], [0], [0], [0, 0, 1, 0], [], []>} : vector<8x8xbf16>, vector<8x8xbf16>, vector<8x8xf32> -> vector<8x8xf32>
    %cst_24 = arith.constant dense<0xFF800000> : vector<8xf32>
    %33 = vector.multi_reduction <maximumf>, %32, %cst_24 [1] : vector<8x8xf32> to vector<8xf32>
    %34 = vector.shape_cast %33 : vector<8xf32> to vector<8x1xf32>
    %35 = vector.broadcast %34 : vector<8x1xf32> to vector<8x8xf32>
    %36 = arith.subf %32, %35 : vector<8x8xf32>
    %37 = math.exp %36 : vector<8x8xf32>
    %cst_25 = arith.constant dense<0.000000e+00> : vector<8xf32>
    %38 = vector.multi_reduction <add>, %37, %cst_25 [1] : vector<8x8xf32> to vector<8xf32>
    %39 = vector.shape_cast %38 : vector<8xf32> to vector<8x1xf32>
    %40 = arith.truncf %37 : vector<8x8xf32> to vector<8x8xbf16>
    %cst_26 = arith.constant dense<0.000000e+00> : vector<8x8xf32>
    %41 = tpu.matmul %40, %31, %cst_26 {dimension_numbers = #tpu.dot_dimension_numbers<[1], [0], [0], [1], [0, 0, 1, 1], [], []>} : vector<8x8xbf16>, vector<8x8xbf16>, vector<8x8xf32> -> vector<8x8xf32>
    %42 = tpu.reciprocal %39 {approx = true} : vector<8x1xf32> -> vector<8x1xf32>
    %43 = vector.broadcast %42 : vector<8x1xf32> to vector<8x8xf32>
    %44 = arith.mulf %41, %43 : vector<8x8xf32>
    %c0_27 = arith.constant 0 : index
    %c0_28 = arith.constant 0 : index
    %45 = vector.load %arg13[%c0_27, %c0_28] : memref<32x8xf32, #tpu.memory_space<vmem>>, vector<8x8xf32>
    tpu.vector_store %arg13[%c0_27, %c0_28], %44 {strides = array<i32>} : memref<32x8xf32, #tpu.memory_space<vmem>>, vector<8x8xf32>,
    %46 = vector.extract_strided_slice %26 {offsets = [0, 8], sizes = [8, 8], strides = [1, 1]} : vector<8x32xbf16> to vector<8x8xbf16>
    %47 = vector.extract_strided_slice %27 {offsets = [0, 8], sizes = [8, 8], strides = [1, 1]} : vector<8x32xbf16> to vector<8x8xbf16>
    %48 = vector.extract_strided_slice %28 {offsets = [0, 8], sizes = [8, 8], strides = [1, 1]} : vector<8x32xbf16> to vector<8x8xbf16>
    %cst_29 = arith.constant dense<0.000000e+00> : vector<8x8xf32>
    %49 = tpu.matmul %46, %47, %cst_29 {dimension_numbers = #tpu.dot_dimension_numbers<[1], [1], [0], [0], [0, 0, 1, 0], [], []>} : vector<8x8xbf16>, vector<8x8xbf16>, vector<8x8xf32> -> vector<8x8xf32>
    %cst_30 = arith.constant dense<0xFF800000> : vector<8xf32>
    %50 = vector.multi_reduction <maximumf>, %49, %cst_30 [1] : vector<8x8xf32> to vector<8xf32>
    %51 = vector.shape_cast %50 : vector<8xf32> to vector<8x1xf32>
    %52 = vector.broadcast %51 : vector<8x1xf32> to vector<8x8xf32>
    %53 = arith.subf %49, %52 : vector<8x8xf32>
    %54 = math.exp %53 : vector<8x8xf32>
    %cst_31 = arith.constant dense<0.000000e+00> : vector<8xf32>
    %55 = vector.multi_reduction <add>, %54, %cst_31 [1] : vector<8x8xf32> to vector<8xf32>
    %56 = vector.shape_cast %55 : vector<8xf32> to vector<8x1xf32>
    %57 = arith.truncf %54 : vector<8x8xf32> to vector<8x8xbf16>
    %cst_32 = arith.constant dense<0.000000e+00> : vector<8x8xf32>
    %58 = tpu.matmul %57, %48, %cst_32 {dimension_numbers = #tpu.dot_dimension_numbers<[1], [0], [0], [1], [0, 0, 1, 1], [], []>} : vector<8x8xbf16>, vector<8x8xbf16>, vector<8x8xf32> -> vector<8x8xf32>
    %59 = tpu.reciprocal %56 {approx = true} : vector<8x1xf32> -> vector<8x1xf32>
    %60 = vector.broadcast %59 : vector<8x1xf32> to vector<8x8xf32>
    %61 = arith.mulf %58, %60 : vector<8x8xf32>
    %c8 = arith.constant 8 : index
    %c0_33 = arith.constant 0 : index
    %62 = vector.load %arg13[%c8, %c0_33] : memref<32x8xf32, #tpu.memory_space<vmem>>, vector<8x8xf32>
    tpu.vector_store %arg13[%c8, %c0_33], %61 {strides = array<i32>} : memref<32x8xf32, #tpu.memory_space<vmem>>, vector<8x8xf32>,
    %63 = vector.extract_strided_slice %26 {offsets = [0, 16], sizes = [8, 8], strides = [1, 1]} : vector<8x32xbf16> to vector<8x8xbf16>
    %64 = vector.extract_strided_slice %27 {offsets = [0, 16], sizes = [8, 8], strides = [1, 1]} : vector<8x32xbf16> to vector<8x8xbf16>
    %65 = vector.extract_strided_slice %28 {offsets = [0, 16], sizes = [8, 8], strides = [1, 1]} : vector<8x32xbf16> to vector<8x8xbf16>
    %cst_34 = arith.constant dense<0.000000e+00> : vector<8x8xf32>
    %66 = tpu.matmul %63, %64, %cst_34 {dimension_numbers = #tpu.dot_dimension_numbers<[1], [1], [0], [0], [0, 0, 1, 0], [], []>} : vector<8x8xbf16>, vector<8x8xbf16>, vector<8x8xf32> -> vector<8x8xf32>
    %cst_35 = arith.constant dense<0xFF800000> : vector<8xf32>
    %67 = vector.multi_reduction <maximumf>, %66, %cst_35 [1] : vector<8x8xf32> to vector<8xf32>
    %68 = vector.shape_cast %67 : vector<8xf32> to vector<8x1xf32>
    %69 = vector.broadcast %68 : vector<8x1xf32> to vector<8x8xf32>
    %70 = arith.subf %66, %69 : vector<8x8xf32>
    %71 = math.exp %70 : vector<8x8xf32>
    %cst_36 = arith.constant dense<0.000000e+00> : vector<8xf32>
    %72 = vector.multi_reduction <add>, %71, %cst_36 [1] : vector<8x8xf32> to vector<8xf32>
    %73 = vector.shape_cast %72 : vector<8xf32> to vector<8x1xf32>
    %74 = arith.truncf %71 : vector<8x8xf32> to vector<8x8xbf16>
    %cst_37 = arith.constant dense<0.000000e+00> : vector<8x8xf32>
    %75 = tpu.matmul %74, %65, %cst_37 {dimension_numbers = #tpu.dot_dimension_numbers<[1], [0], [0], [1], [0, 0, 1, 1], [], []>} : vector<8x8xbf16>, vector<8x8xbf16>, vector<8x8xf32> -> vector<8x8xf32>
    %76 = tpu.reciprocal %73 {approx = true} : vector<8x1xf32> -> vector<8x1xf32>
    %77 = vector.broadcast %76 : vector<8x1xf32> to vector<8x8xf32>
    %78 = arith.mulf %75, %77 : vector<8x8xf32>
    %c16 = arith.constant 16 : index
    %c0_38 = arith.constant 0 : index
    %79 = vector.load %arg13[%c16, %c0_38] : memref<32x8xf32, #tpu.memory_space<vmem>>, vector<8x8xf32>
    tpu.vector_store %arg13[%c16, %c0_38], %78 {strides = array<i32>} : memref<32x8xf32, #tpu.memory_space<vmem>>, vector<8x8xf32>,
    %80 = vector.extract_strided_slice %26 {offsets = [0, 24], sizes = [8, 8], strides = [1, 1]} : vector<8x32xbf16> to vector<8x8xbf16>
    %81 = vector.extract_strided_slice %27 {offsets = [0, 24], sizes = [8, 8], strides = [1, 1]} : vector<8x32xbf16> to vector<8x8xbf16>
    %82 = vector.extract_strided_slice %28 {offsets = [0, 24], sizes = [8, 8], strides = [1, 1]} : vector<8x32xbf16> to vector<8x8xbf16>
    %cst_39 = arith.constant dense<0.000000e+00> : vector<8x8xf32>
    %83 = tpu.matmul %80, %81, %cst_39 {dimension_numbers = #tpu.dot_dimension_numbers<[1], [1], [0], [0], [0, 0, 1, 0], [], []>} : vector<8x8xbf16>, vector<8x8xbf16>, vector<8x8xf32> -> vector<8x8xf32>
    %cst_40 = arith.constant dense<0xFF800000> : vector<8xf32>
    %84 = vector.multi_reduction <maximumf>, %83, %cst_40 [1] : vector<8x8xf32> to vector<8xf32>
    %85 = vector.shape_cast %84 : vector<8xf32> to vector<8x1xf32>
    %86 = vector.broadcast %85 : vector<8x1xf32> to vector<8x8xf32>
    %87 = arith.subf %83, %86 : vector<8x8xf32>
    %88 = math.exp %87 : vector<8x8xf32>
    %cst_41 = arith.constant dense<0.000000e+00> : vector<8xf32>
    %89 = vector.multi_reduction <add>, %88, %cst_41 [1] : vector<8x8xf32> to vector<8xf32>
    %90 = vector.shape_cast %89 : vector<8xf32> to vector<8x1xf32>
    %91 = arith.truncf %88 : vector<8x8xf32> to vector<8x8xbf16>
    %cst_42 = arith.constant dense<0.000000e+00> : vector<8x8xf32>
    %92 = tpu.matmul %91, %82, %cst_42 {dimension_numbers = #tpu.dot_dimension_numbers<[1], [0], [0], [1], [0, 0, 1, 1], [], []>} : vector<8x8xbf16>, vector<8x8xbf16>, vector<8x8xf32> -> vector<8x8xf32>
    %93 = tpu.reciprocal %90 {approx = true} : vector<8x1xf32> -> vector<8x1xf32>
    %94 = vector.broadcast %93 : vector<8x1xf32> to vector<8x8xf32>
    %95 = arith.mulf %92, %94 : vector<8x8xf32>
    %c24 = arith.constant 24 : index
    %c0_43 = arith.constant 0 : index
    %96 = vector.load %arg13[%c24, %c0_43] : memref<32x8xf32, #tpu.memory_space<vmem>>, vector<8x8xf32>
    tpu.vector_store %arg13[%c24, %c0_43], %95 {strides = array<i32>} : memref<32x8xf32, #tpu.memory_space<vmem>>, vector<8x8xf32>,
    %cst_44 = arith.constant 0.000000e+00 : f32
    %97 = vector.broadcast %cst_44 : f32 to vector<8x32xf32>
    %c0_45 = arith.constant 0 : index
    %c0_46 = arith.constant 0 : index
    %98 = vector.load %arg14[%c0_45, %c0_46] : memref<8x32xf32, #tpu.memory_space<vmem>>, vector<8x32xf32>
    tpu.vector_store %arg14[%c0_45, %c0_46], %97 {strides = array<i32>} : memref<8x32xf32, #tpu.memory_space<vmem>>, vector<8x32xf32>,
    %c0_47 = arith.constant 0 : index
    %c0_48 = arith.constant 0 : index
    %99 = tpu.strided_load %arg13[%c0_47, %c0_48] {strides = array<i32: 4, 1>} : memref<32x8xf32, #tpu.memory_space<vmem>>, vector<8x8xf32>
    %c0_49 = arith.constant 0 : index
    %c0_50 = arith.constant 0 : index
    %100 = vector.load %arg14[%c0_49, %c0_50] : memref<8x32xf32, #tpu.memory_space<vmem>>, vector<8x32xf32>
    %101 = arith.truncf %99 : vector<8x8xf32> to vector<8x8xbf16>
    %c0_51 = arith.constant 0 : index
    %c0_52 = arith.constant 0 : index
    %102 = vector.load %arg10[%c0_51, %c0_52] : memref<32x32xbf16, #tpu.memory_space<vmem>>, vector<8x32xbf16>
    %cst_53 = arith.constant dense<0.000000e+00> : vector<8x32xf32>
    %103 = tpu.matmul %101, %102, %cst_53 {dimension_numbers = #tpu.dot_dimension_numbers<[1], [0], [0], [1], [0, 0, 1, 1], [], []>} : vector<8x8xbf16>, vector<8x32xbf16>, vector<8x32xf32> -> vector<8x32xf32>
    %104 = arith.addf %100, %103 : vector<8x32xf32>
    %c0_54 = arith.constant 0 : index
    %c0_55 = arith.constant 0 : index
    %105 = vector.load %arg14[%c0_54, %c0_55] : memref<8x32xf32, #tpu.memory_space<vmem>>, vector<8x32xf32>
    tpu.vector_store %arg14[%c0_54, %c0_55], %104 {strides = array<i32>} : memref<8x32xf32, #tpu.memory_space<vmem>>, vector<8x32xf32>,
    %c1 = arith.constant 1 : index
    %c0_56 = arith.constant 0 : index
    %106 = tpu.strided_load %arg13[%c1, %c0_56] {strides = array<i32: 4, 1>} : memref<32x8xf32, #tpu.memory_space<vmem>>, vector<8x8xf32>
    %c0_57 = arith.constant 0 : index
    %c0_58 = arith.constant 0 : index
    %107 = vector.load %arg14[%c0_57, %c0_58] : memref<8x32xf32, #tpu.memory_space<vmem>>, vector<8x32xf32>
    %108 = arith.truncf %106 : vector<8x8xf32> to vector<8x8xbf16>
    %c8_59 = arith.constant 8 : index
    %c0_60 = arith.constant 0 : index
    %109 = vector.load %arg10[%c8_59, %c0_60] : memref<32x32xbf16, #tpu.memory_space<vmem>>, vector<8x32xbf16>
    %cst_61 = arith.constant dense<0.000000e+00> : vector<8x32xf32>
    %110 = tpu.matmul %108, %109, %cst_61 {dimension_numbers = #tpu.dot_dimension_numbers<[1], [0], [0], [1], [0, 0, 1, 1], [], []>} : vector<8x8xbf16>, vector<8x32xbf16>, vector<8x32xf32> -> vector<8x32xf32>
    %111 = arith.addf %107, %110 : vector<8x32xf32>
    %c0_62 = arith.constant 0 : index
    %c0_63 = arith.constant 0 : index
    %112 = vector.load %arg14[%c0_62, %c0_63] : memref<8x32xf32, #tpu.memory_space<vmem>>, vector<8x32xf32>
    tpu.vector_store %arg14[%c0_62, %c0_63], %111 {strides = array<i32>} : memref<8x32xf32, #tpu.memory_space<vmem>>, vector<8x32xf32>,
    %c2 = arith.constant 2 : index
    %c0_64 = arith.constant 0 : index
    %113 = tpu.strided_load %arg13[%c2, %c0_64] {strides = array<i32: 4, 1>} : memref<32x8xf32, #tpu.memory_space<vmem>>, vector<8x8xf32>
    %c0_65 = arith.constant 0 : index
    %c0_66 = arith.constant 0 : index
    %114 = vector.load %arg14[%c0_65, %c0_66] : memref<8x32xf32, #tpu.memory_space<vmem>>, vector<8x32xf32>
    %115 = arith.truncf %113 : vector<8x8xf32> to vector<8x8xbf16>
    %c16_67 = arith.constant 16 : index
    %c0_68 = arith.constant 0 : index
    %116 = vector.load %arg10[%c16_67, %c0_68] : memref<32x32xbf16, #tpu.memory_space<vmem>>, vector<8x32xbf16>
    %cst_69 = arith.constant dense<0.000000e+00> : vector<8x32xf32>
    %117 = tpu.matmul %115, %116, %cst_69 {dimension_numbers = #tpu.dot_dimension_numbers<[1], [0], [0], [1], [0, 0, 1, 1], [], []>} : vector<8x8xbf16>, vector<8x32xbf16>, vector<8x32xf32> -> vector<8x32xf32>
    %118 = arith.addf %114, %117 : vector<8x32xf32>
    %c0_70 = arith.constant 0 : index
    %c0_71 = arith.constant 0 : index
    %119 = vector.load %arg14[%c0_70, %c0_71] : memref<8x32xf32, #tpu.memory_space<vmem>>, vector<8x32xf32>
    tpu.vector_store %arg14[%c0_70, %c0_71], %118 {strides = array<i32>} : memref<8x32xf32, #tpu.memory_space<vmem>>, vector<8x32xf32>,
    %c3 = arith.constant 3 : index
    %c0_72 = arith.constant 0 : index
    %120 = tpu.strided_load %arg13[%c3, %c0_72] {strides = array<i32: 4, 1>} : memref<32x8xf32, #tpu.memory_space<vmem>>, vector<8x8xf32>
    %c0_73 = arith.constant 0 : index
    %c0_74 = arith.constant 0 : index
    %121 = vector.load %arg14[%c0_73, %c0_74] : memref<8x32xf32, #tpu.memory_space<vmem>>, vector<8x32xf32>
    %122 = arith.truncf %120 : vector<8x8xf32> to vector<8x8xbf16>
    %c24_75 = arith.constant 24 : index
    %c0_76 = arith.constant 0 : index
    %123 = vector.load %arg10[%c24_75, %c0_76] : memref<32x32xbf16, #tpu.memory_space<vmem>>, vector<8x32xbf16>
    %cst_77 = arith.constant dense<0.000000e+00> : vector<8x32xf32>
    %124 = tpu.matmul %122, %123, %cst_77 {dimension_numbers = #tpu.dot_dimension_numbers<[1], [0], [0], [1], [0, 0, 1, 1], [], []>} : vector<8x8xbf16>, vector<8x32xbf16>, vector<8x32xf32> -> vector<8x32xf32>
    %125 = arith.addf %121, %124 : vector<8x32xf32>
    %c0_78 = arith.constant 0 : index
    %c0_79 = arith.constant 0 : index
    %126 = vector.load %arg14[%c0_78, %c0_79] : memref<8x32xf32, #tpu.memory_space<vmem>>, vector<8x32xf32>
    tpu.vector_store %arg14[%c0_78, %c0_79], %125 {strides = array<i32>} : memref<8x32xf32, #tpu.memory_space<vmem>>, vector<8x32xf32>,
    %c0_80 = arith.constant 0 : index
    %c0_81 = arith.constant 0 : index
    %127 = vector.load %arg14[%c0_80, %c0_81] : memref<8x32xf32, #tpu.memory_space<vmem>>, vector<8x32xf32>
    %c0_82 = arith.constant 0 : index
    %c0_83 = arith.constant 0 : index
    %128 = vector.load %arg11[%c0_82, %c0_83] : memref<1x32xf32, #tpu.memory_space<vmem>>, vector<1x32xf32>
    %129 = vector.broadcast %128 : vector<1x32xf32> to vector<8x32xf32>
    %130 = arith.addf %127, %129 : vector<8x32xf32>
    %c0_84 = arith.constant 0 : index
    %c0_85 = arith.constant 0 : index
    %c0_86 = arith.constant 0 : index
    %131 = vector.load %arg12[%c0_84, %c0_85, %c0_86] : memref<1x8x32xf32, #tpu.memory_space<vmem>>, vector<1x8x32xf32>
    %132 = vector.shape_cast %131 : vector<1x8x32xf32> to vector<8x32xf32>
    %133 = vector.shape_cast %130 : vector<8x32xf32> to vector<1x8x32xf32>
    tpu.vector_store %arg12[%c0_84, %c0_85, %c0_86], %133 {strides = array<i32>} : memref<1x8x32xf32, #tpu.memory_space<vmem>>, vector<1x8x32xf32>,
    return
  }
  func.func @transform_0(%arg0: i32) -> (i32, i32, i32) {
    %c0_i32 = arith.constant 0 : i32
    %c0_i32_0 = arith.constant 0 : i32
    %c0_i32_1 = arith.constant 0 : i32
    return %arg0, %c0_i32, %c0_i32_0 : i32, i32, i32
  }
  func.func @transform_1(%arg0: i32) -> (i32, i32, i32) {
    %c0_i32 = arith.constant 0 : i32
    %c0_i32_0 = arith.constant 0 : i32
    %c0_i32_1 = arith.constant 0 : i32
    return %arg0, %c0_i32, %c0_i32_0 : i32, i32, i32
  }
  func.func @transform_2(%arg0: i32) -> (i32, i32, i32) {
    %c0_i32 = arith.constant 0 : i32
    %c0_i32_0 = arith.constant 0 : i32
    %c0_i32_1 = arith.constant 0 : i32
    return %arg0, %c0_i32, %c0_i32_0 : i32, i32, i32
  }
  func.func @transform_3(%arg0: i32) -> (i32, i32) {
    %c0_i32 = arith.constant 0 : i32
    %c0_i32_0 = arith.constant 0 : i32
    %c0_i32_1 = arith.constant 0 : i32
    return %c0_i32, %c0_i32_0 : i32, i32
  }
  func.func @transform_4(%arg0: i32) -> (i32, i32) {
    %c0_i32 = arith.constant 0 : i32
    %c0_i32_0 = arith.constant 0 : i32
    %c0_i32_1 = arith.constant 0 : i32
    return %c0_i32, %c0_i32_0 : i32, i32
  }
  func.func @transform_5(%arg0: i32) -> (i32, i32) {
    %c0_i32 = arith.constant 0 : i32
    %c0_i32_0 = arith.constant 0 : i32
    %c0_i32_1 = arith.constant 0 : i32
    return %c0_i32, %c0_i32_0 : i32, i32
  }
  func.func @transform_6(%arg0: i32) -> (i32, i32) {
    %c0_i32 = arith.constant 0 : i32
    %c0_i32_0 = arith.constant 0 : i32
    %c0_i32_1 = arith.constant 0 : i32
    return %c0_i32, %c0_i32_0 : i32, i32
  }
  func.func @transform_7(%arg0: i32) -> (i32, i32) {
    %c0_i32 = arith.constant 0 : i32
    %c0_i32_0 = arith.constant 0 : i32
    %c0_i32_1 = arith.constant 0 : i32
    return %c0_i32, %c0_i32_0 : i32, i32
  }
  func.func @transform_8(%arg0: i32) -> (i32, i32) {
    %c0_i32 = arith.constant 0 : i32
    %c0_i32_0 = arith.constant 0 : i32
    %c0_i32_1 = arith.constant 0 : i32
    return %c0_i32, %c0_i32_0 : i32, i32
  }
  func.func @transform_9(%arg0: i32) -> (i32, i32) {
    %c0_i32 = arith.constant 0 : i32
    %c0_i32_0 = arith.constant 0 : i32
    %c0_i32_1 = arith.constant 0 : i32
    return %c0_i32, %c0_i32_0 : i32, i32
  }
  func.func @transform_10(%arg0: i32) -> (i32, i32) {
    %c0_i32 = arith.constant 0 : i32
    %c0_i32_0 = arith.constant 0 : i32
    %c0_i32_1 = arith.constant 0 : i32
    return %c0_i32, %c0_i32_0 : i32, i32
  }
  func.func @transform_11(%arg0: i32) -> (i32, i32, i32) {
    %c0_i32 = arith.constant 0 : i32
    %c0_i32_0 = arith.constant 0 : i32
    %c0_i32_1 = arith.constant 0 : i32
    return %arg0, %c0_i32, %c0_i32_0 : i32, i32, i32
  }
}

</mosaic_0001>

<llo_original>
// kernel: tpu_custom_call.1
$region0: #{tpu_custom_call.1}
  #allocation0 [shape = 'u32[]', space=smem, size = 0x4, offset = 0x4, fixed_abs, tag = 'smem constant byte address 0x4 - core index']
  #allocation1 [shape = 'u32[144,128]{1,0:T(1,128)}', space=vmem, size = 0x12000, scoped, tag = 'internal scratch']
  #allocation2 [shape = 'f32[32,8]{1,0:T(8,128)}', space=vmem, size = 0x4000, scoped, tag = 'scratch operand']
  #allocation3 [shape = 'f32[8,32]{1,0:T(8,128)}', space=vmem, size = 0x1000, scoped, tag = 'scratch operand']
  %s0 = inlined_call_operand.hbm [shape: f32[2,8,32], index: 0, kind: input, shape index: {}]
  %s1 = inlined_call_operand.hbm [shape: f32[2,8,32], index: 1, kind: input, shape index: {}]
  %s2 = inlined_call_operand.hbm [shape: f32[2,8,32], index: 2, kind: input, shape index: {}]
  %s3 = inlined_call_operand.hbm [shape: bf16[32,32], index: 3, kind: input, shape index: {}]
  %s4 = inlined_call_operand.vmem [shape: f32[1,32], index: 4, kind: input, shape index: {}]
  %s5 = inlined_call_operand.vmem [shape: bf16[32,32], index: 5, kind: input, shape index: {}]
  %s6 = inlined_call_operand.vmem [shape: f32[1,32], index: 6, kind: input, shape index: {}]
  %s7 = inlined_call_operand.hbm [shape: bf16[32,32], index: 7, kind: input, shape index: {}]
  %s8 = inlined_call_operand.hbm [shape: f32[1,32], index: 8, kind: input, shape index: {}]
  %s9 = inlined_call_operand.vmem [shape: bf16[32,32], index: 9, kind: input, shape index: {}]
  %s10 = inlined_call_operand.vmem [shape: f32[1,32], index: 10, kind: input, shape index: {}]
  %s11 = inlined_call_operand.hbm [shape: f32[2,8,32], index: 11, kind: output, shape index: {}]
  %s12 = sld [smem:[#allocation0]]
  $region101: #{tpu_custom_call.1} parent=0
    _
  %s14 = ssub.s32 1, %s12
  %s15 = scalar_select 0, %s14, %s12
  $region1: #{tpu_custom_call.1} parent=0
    #allocation4 [shape = 'u8[8192]{0}', space=vmem, size = 0x2000, scoped, tag = 'input window, operand 0']
    #allocation5 [shape = 's32[2]{0}', space=sflag, size = 0x8, scoped, tag = 'scoped memory for tpu_custom_call.1']
    #allocation6 [shape = 's32[2]{0}', space=sflag, size = 0x8, scoped, tag = 'scoped memory for tpu_custom_call.1']
    #allocation7 [shape = 'u8[8192]{0}', space=vmem, size = 0x2000, scoped, tag = 'input window, operand 1']
    #allocation8 [shape = 's32[2]{0}', space=sflag, size = 0x8, scoped, tag = 'scoped memory for tpu_custom_call.1']
    #allocation9 [shape = 'u8[8192]{0}', space=vmem, size = 0x2000, scoped, tag = 'input window, operand 2']
    #allocation10 [shape = 'u8[8192]{0}', space=vmem, size = 0x2000, scoped, tag = 'input window, operand 3, single buffered']
    #allocation11 [shape = 's32[1]{0}', space=sflag, size = 0x4, scoped, tag = 'scoped memory for tpu_custom_call.1']
    #allocation12 [shape = 'u8[8192]{0}', space=vmem, size = 0x2000, scoped, tag = 'input window, operand 7, single buffered']
    #allocation13 [shape = 'u8[512]{0}', space=vmem, size = 0x400, scoped, tag = 'input window, operand 8, single buffered']
    #allocation14 [shape = 's32[1]{0}', space=sflag, size = 0x4, scoped, tag = 'scoped memory for tpu_custom_call.1']
    #allocation15 [shape = 'u8[8192]{0}', space=vmem, size = 0x2000, scoped, tag = 'output window, operand 0']
    %16 = vsyncpa [#allocation5], 0
    %s17 = scalar_lea.sflag [#allocation5], 1
    %18 = vsyncpa %s17, 0
    %19 = vsyncpa [#allocation8], 0
    %s20 = scalar_lea.sflag [#allocation8], 1
    %21 = vsyncpa %s20, 0
    %22 = vsyncpa [#allocation11], 0
    %23 = vsyncpa [#allocation14], 0
    %24 = vsyncpa [#allocation6], 0
    %s25 = scalar_lea.sflag [#allocation6], 1
    %26 = vsyncpa %s25, 0
    loop: start=0, step=1, limit=4
    $region2: #{tpu_custom_call.1} parent=1 // loop_pre_header
      _
    $region3: #{tpu_custom_call.1} parent=1 // loop_header
      %s28 = sphi 0, %s32
      %p29 = scmp.ge.s32.totalorder %s28, 4
      %s38 = sphi 0, %s40
      %s41 = sphi 0, %s38
      %s42 = sphi 0, %s41
      %s58 = sphi 0, %s42
      %s64 = sphi 0, %s66
      %s67 = sphi 0, %s64
      %s68 = sphi 0, %s67
      %s84 = sphi 0, %s68
      %s90 = sphi 0, %s92
      %s93 = sphi 0, %s90
      %s94 = sphi 0, %s93
      %s110 = sphi 0, %s94
      %s114 = sphi 0, %s114
      %s116 = sphi 0, %s114
      %s117 = sphi 0, %s116
      %s131 = sphi 0, %s117
      %s135 = sphi 0, %s135
      %s137 = sphi 0, %s135
      %s138 = sphi 0, %s137
      %s152 = sphi 0, %s138
      %s156 = sphi 0, %s156
      %s158 = sphi 0, %s156
      %s159 = sphi 0, %s158
      %s173 = sphi 0, %s159
      %s177 = sphi 0, %s177
      %s179 = sphi 0, %s177
      %s180 = sphi 0, %s179
      %s194 = sphi 0, %s180
      %s198 = sphi 0, %s198
      %s200 = sphi 0, %s198
      %s201 = sphi 0, %s200
      %s215 = sphi 0, %s201
      %s219 = sphi 0, %s219
      %s221 = sphi 0, %s219
      %s222 = sphi 0, %s221
      %s236 = sphi 0, %s222
      %s240 = sphi 0, %s240
      %s242 = sphi 0, %s240
      %s243 = sphi 0, %s242
      %s257 = sphi 0, %s243
      %s261 = sphi 0, %s261
      %s263 = sphi 0, %s261
      %s264 = sphi 0, %s263
      %s278 = sphi 0, %s264
      %s284 = sphi 0, %s286
      %s287 = sphi 0, %s284
      %s288 = sphi 0, %s287
      %s304 = sphi 0, %s288
    $region4: #{tpu_custom_call.1} parent=1 // loop_header_branch
      %31 = sbr.rel (%p29) target = $region8
    $region5: #{tpu_custom_call.1} parent=1 // loop_body
      %s33 = ssub.s32 %s28, 1
      %s34 = ssub.s32 %s28, 2
      %s35 = sadd.s32 %s28, 1
      %s36 = ssub.s32 %s28, %s35
      %p37 = scmp.eq.s32.totalorder %s36, 0
      %s39 = sadd.s32 %s38, 1
      %s40 = scalar_select %p37, %s38, %s39
      %p43 = pneg %p37
      %p44 = scmp.eq.s32.totalorder %s28, 1
      %p45 = por %p43, %p44
      %p46 = scmp.ne.s32.totalorder %s38, %s41
      %p47 = scmp.eq.s32.totalorder %s28, 0
      %p48 = por %p46, %p47
      %p49 = scmp.ne.s32.totalorder %s38, %s41
      %p50 = scmp.eq.s32.totalorder %s33, 1
      %p51 = por %p49, %p50
      %p52 = scmp.ne.s32.totalorder %s41, %s42
      %p53 = scmp.eq.s32.totalorder %s33, 0
      %p54 = por %p52, %p53
      %p55 = scmp.ne.s32.totalorder %s41, %s42
      %p56 = scmp.eq.s32.totalorder %s34, 1
      %p57 = por %p55, %p56
      %p59 = scmp.ne.s32.totalorder %s42, %s58
      %p60 = scmp.eq.s32.totalorder %s34, 0
      %p61 = por %p59, %p60
      %s62 = ssub.s32 %s28, %s35
      %p63 = scmp.eq.s32.totalorder %s62, 0
      %s65 = sadd.s32 %s64, 1
      %s66 = scalar_select %p63, %s64, %s65
      %p69 = pneg %p63
      %p70 = scmp.eq.s32.totalorder %s28, 1
      %p71 = por %p69, %p70
      %p72 = scmp.ne.s32.totalorder %s64, %s67
      %p73 = scmp.eq.s32.totalorder %s28, 0
      %p74 = por %p72, %p73
      %p75 = scmp.ne.s32.totalorder %s64, %s67
      %p76 = scmp.eq.s32.totalorder %s33, 1
      %p77 = por %p75, %p76
      %p78 = scmp.ne.s32.totalorder %s67, %s68
      %p79 = scmp.eq.s32.totalorder %s33, 0
      %p80 = por %p78, %p79
      %p81 = scmp.ne.s32.totalorder %s67, %s68
      %p82 = scmp.eq.s32.totalorder %s34, 1
      %p83 = por %p81, %p82
      %p85 = scmp.ne.s32.totalorder %s68, %s84
      %p86 = scmp.eq.s32.totalorder %s34, 0
      %p87 = por %p85, %p86
      %s88 = ssub.s32 %s28, %s35
      %p89 = scmp.eq.s32.totalorder %s88, 0
      %s91 = sadd.s32 %s90, 1
      %s92 = scalar_select %p89, %s90, %s91
      %p95 = pneg %p89
      %p96 = scmp.eq.s32.totalorder %s28, 1
      %p97 = por %p95, %p96
      %p98 = scmp.ne.s32.totalorder %s90, %s93
      %p99 = scmp.eq.s32.totalorder %s28, 0
      %p100 = por %p98, %p99
      %p101 = scmp.ne.s32.totalorder %s90, %s93
      %p102 = scmp.eq.s32.totalorder %s33, 1
      %p103 = por %p101, %p102
      %p104 = scmp.ne.s32.totalorder %s93, %s94
      %p105 = scmp.eq.s32.totalorder %s33, 0
      %p106 = por %p104, %p105
      %p107 = scmp.ne.s32.totalorder %s93, %s94
      %p108 = scmp.eq.s32.totalorder %s34, 1
      %p109 = por %p107, %p108
      %p111 = scmp.ne.s32.totalorder %s94, %s110
      %p112 = scmp.eq.s32.totalorder %s34, 0
      %p113 = por %p111, %p112
      %s115 = sadd.s32 %s114, 1
      %p118 = scmp.eq.s32.totalorder %s28, 1
      %p119 = scmp.ne.s32.totalorder %s114, %s116
      %p120 = scmp.eq.s32.totalorder %s28, 0
      %p121 = por %p119, %p120
      %p122 = scmp.ne.s32.totalorder %s114, %s116
      %p123 = scmp.eq.s32.totalorder %s33, 1
      %p124 = por %p122, %p123
      %p125 = scmp.ne.s32.totalorder %s116, %s117
      %p126 = scmp.eq.s32.totalorder %s33, 0
      %p127 = por %p125, %p126
      %p128 = scmp.ne.s32.totalorder %s116, %s117
      %p129 = scmp.eq.s32.totalorder %s34, 1
      %p130 = por %p128, %p129
      %p132 = scmp.ne.s32.totalorder %s117, %s131
      %p133 = scmp.eq.s32.totalorder %s34, 0
      %p134 = por %p132, %p133
      %s136 = sadd.s32 %s135, 1
      %p139 = scmp.eq.s32.totalorder %s28, 1
      %p140 = scmp.ne.s32.totalorder %s135, %s137
      %p141 = scmp.eq.s32.totalorder %s28, 0
      %p142 = por %p140, %p141
      %p143 = scmp.ne.s32.totalorder %s135, %s137
      %p144 = scmp.eq.s32.totalorder %s33, 1
      %p145 = por %p143, %p144
      %p146 = scmp.ne.s32.totalorder %s137, %s138
      %p147 = scmp.eq.s32.totalorder %s33, 0
      %p148 = por %p146, %p147
      %p149 = scmp.ne.s32.totalorder %s137, %s138
      %p150 = scmp.eq.s32.totalorder %s34, 1
      %p151 = por %p149, %p150
      %p153 = scmp.ne.s32.totalorder %s138, %s152
      %p154 = scmp.eq.s32.totalorder %s34, 0
      %p155 = por %p153, %p154
      %s157 = sadd.s32 %s156, 1
      %p160 = scmp.eq.s32.totalorder %s28, 1
      %p161 = scmp.ne.s32.totalorder %s156, %s158
      %p162 = scmp.eq.s32.totalorder %s28, 0
      %p163 = por %p161, %p162
      %p164 = scmp.ne.s32.totalorder %s156, %s158
      %p165 = scmp.eq.s32.totalorder %s33, 1
      %p166 = por %p164, %p165
      %p167 = scmp.ne.s32.totalorder %s158, %s159
      %p168 = scmp.eq.s32.totalorder %s33, 0
      %p169 = por %p167, %p168
      %p170 = scmp.ne.s32.totalorder %s158, %s159
      %p171 = scmp.eq.s32.totalorder %s34, 1
      %p172 = por %p170, %p171
      %p174 = scmp.ne.s32.totalorder %s159, %s173
      %p175 = scmp.eq.s32.totalorder %s34, 0
      %p176 = por %p174, %p175
      %s178 = sadd.s32 %s177, 1
      %p181 = scmp.eq.s32.totalorder %s28, 1
      %p182 = scmp.ne.s32.totalorder %s177, %s179
      %p183 = scmp.eq.s32.totalorder %s28, 0
      %p184 = por %p182, %p183
      %p185 = scmp.ne.s32.totalorder %s177, %s179
      %p186 = scmp.eq.s32.totalorder %s33, 1
      %p187 = por %p185, %p186
      %p188 = scmp.ne.s32.totalorder %s179, %s180
      %p189 = scmp.eq.s32.totalorder %s33, 0
      %p190 = por %p188, %p189
      %p191 = scmp.ne.s32.totalorder %s179, %s180
      %p192 = scmp.eq.s32.totalorder %s34, 1
      %p193 = por %p191, %p192
      %p195 = scmp.ne.s32.totalorder %s180, %s194
      %p196 = scmp.eq.s32.totalorder %s34, 0
      %p197 = por %p195, %p196
      %s199 = sadd.s32 %s198, 1
      %p202 = scmp.eq.s32.totalorder %s28, 1
      %p203 = scmp.ne.s32.totalorder %s198, %s200
      %p204 = scmp.eq.s32.totalorder %s28, 0
      %p205 = por %p203, %p204
      %p206 = scmp.ne.s32.totalorder %s198, %s200
      %p207 = scmp.eq.s32.totalorder %s33, 1
      %p208 = por %p206, %p207
      %p209 = scmp.ne.s32.totalorder %s200, %s201
      %p210 = scmp.eq.s32.totalorder %s33, 0
      %p211 = por %p209, %p210
      %p212 = scmp.ne.s32.totalorder %s200, %s201
      %p213 = scmp.eq.s32.totalorder %s34, 1
      %p214 = por %p212, %p213
      %p216 = scmp.ne.s32.totalorder %s201, %s215
      %p217 = scmp.eq.s32.totalorder %s34, 0
      %p218 = por %p216, %p217
      %s220 = sadd.s32 %s219, 1
      %p223 = scmp.eq.s32.totalorder %s28, 1
      %p224 = scmp.ne.s32.totalorder %s219, %s221
      %p225 = scmp.eq.s32.totalorder %s28, 0
      %p226 = por %p224, %p225
      %p227 = scmp.ne.s32.totalorder %s219, %s221
      %p228 = scmp.eq.s32.totalorder %s33, 1
      %p229 = por %p227, %p228
      %p230 = scmp.ne.s32.totalorder %s221, %s222
      %p231 = scmp.eq.s32.totalorder %s33, 0
      %p232 = por %p230, %p231
      %p233 = scmp.ne.s32.totalorder %s221, %s222
      %p234 = scmp.eq.s32.totalorder %s34, 1
      %p235 = por %p233, %p234
      %p237 = scmp.ne.s32.totalorder %s222, %s236
      %p238 = scmp.eq.s32.totalorder %s34, 0
      %p239 = por %p237, %p238
      %s241 = sadd.s32 %s240, 1
      %p244 = scmp.eq.s32.totalorder %s28, 1
      %p245 = scmp.ne.s32.totalorder %s240, %s242
      %p246 = scmp.eq.s32.totalorder %s28, 0
      %p247 = por %p245, %p246
      %p248 = scmp.ne.s32.totalorder %s240, %s242
      %p249 = scmp.eq.s32.totalorder %s33, 1
      %p250 = por %p248, %p249
      %p251 = scmp.ne.s32.totalorder %s242, %s243
      %p252 = scmp.eq.s32.totalorder %s33, 0
      %p253 = por %p251, %p252
      %p254 = scmp.ne.s32.totalorder %s242, %s243
      %p255 = scmp.eq.s32.totalorder %s34, 1
      %p256 = por %p254, %p255
      %p258 = scmp.ne.s32.totalorder %s243, %s257
      %p259 = scmp.eq.s32.totalorder %s34, 0
      %p260 = por %p258, %p259
      %s262 = sadd.s32 %s261, 1
      %p265 = scmp.eq.s32.totalorder %s28, 1
      %p266 = scmp.ne.s32.totalorder %s261, %s263
      %p267 = scmp.eq.s32.totalorder %s28, 0
      %p268 = por %p266, %p267
      %p269 = scmp.ne.s32.totalorder %s261, %s263
      %p270 = scmp.eq.s32.totalorder %s33, 1
      %p271 = por %p269, %p270
      %p272 = scmp.ne.s32.totalorder %s263, %s264
      %p273 = scmp.eq.s32.totalorder %s33, 0
      %p274 = por %p272, %p273
      %p275 = scmp.ne.s32.totalorder %s263, %s264
      %p276 = scmp.eq.s32.totalorder %s34, 1
      %p277 = por %p275, %p276
      %p279 = scmp.ne.s32.totalorder %s264, %s278
      %p280 = scmp.eq.s32.totalorder %s34, 0
      %p281 = por %p279, %p280
      %s282 = ssub.s32 %s28, %s35
      %p283 = scmp.eq.s32.totalorder %s282, 0
      %s285 = sadd.s32 %s284, 1
      %s286 = scalar_select %p283, %s284, %s285
      %p289 = pneg %p283
      %p290 = scmp.eq.s32.totalorder %s28, 1
      %p291 = por %p289, %p290
      %p292 = scmp.ne.s32.totalorder %s284, %s287
      %p293 = scmp.eq.s32.totalorder %s28, 0
      %p294 = por %p292, %p293
      %p295 = scmp.ne.s32.totalorder %s284, %s287
      %p296 = scmp.eq.s32.totalorder %s33, 1
      %p297 = por %p295, %p296
      %p298 = scmp.ne.s32.totalorder %s287, %s288
      %p299 = scmp.eq.s32.totalorder %s33, 0
      %p300 = por %p298, %p299
      %p301 = scmp.ne.s32.totalorder %s287, %s288
      %p302 = scmp.eq.s32.totalorder %s34, 1
      %p303 = por %p301, %p302
      %p305 = scmp.ne.s32.totalorder %s288, %s304
      %p306 = scmp.eq.s32.totalorder %s34, 0
      %p307 = por %p305, %p306
      %p308 = scmp.le.s32.totalorder 1, %s28
      %p309 = scmp.lt.s32.totalorder %s28, 3
      %p310 = pnand %p308, %p309
      %p311 = pneg %p310
      // Predicated region
      $region9: #{tpu_custom_call.1} parent=5 // pred_check
        _
      $region10: #{tpu_custom_call.1} parent=5 // pred_check_branch
        %313 = sbr.rel (%p310) target = $region12
      $region11: #{tpu_custom_call.1} parent=5 // pred_region
        %s314 = ssub.s32 %s28, 1
        // Predicated region
        $region13: #{tpu_custom_call.1} parent=11 // pred_check
          %p315 = pneg %p127
        $region14: #{tpu_custom_call.1} parent=11 // pred_check_branch
          %317 = sbr.rel (%p315) target = $region16
        $region15: #{tpu_custom_call.1} parent=11 // pred_region
          %s319 = ssub.s32 256, 256
          %320 = vsyncadd [#allocation11], %s319
          %s321 = sshll.u32 [#allocation10], 4
          %s322 = int_to_ptr.vmem [resolvable:$true] %s321
          %327 = dma.hbm_to_vmem [thread:$0]  %s3, 256, %s322, [#allocation11], 64, 64, 4
        $region16: #{tpu_custom_call.1} parent=11 // pred_fallthru
          _
        // Predicated region
        $region17: #{tpu_custom_call.1} parent=11 // pred_check
          %p328 = pneg %p148
        $region18: #{tpu_custom_call.1} parent=11 // pred_check_branch
          %330 = sbr.rel (%p328) target = $region20
        $region19: #{tpu_custom_call.1} parent=11 // pred_region
          _
        $region20: #{tpu_custom_call.1} parent=11 // pred_fallthru
          _
        // Predicated region
        $region21: #{tpu_custom_call.1} parent=11 // pred_check
          %p331 = pneg %p169
        $region22: #{tpu_custom_call.1} parent=11 // pred_check_branch
          %333 = sbr.rel (%p331) target = $region24
        $region23: #{tpu_custom_call.1} parent=11 // pred_region
          _
        $region24: #{tpu_custom_call.1} parent=11 // pred_fallthru
          _
        // Predicated region
        $region25: #{tpu_custom_call.1} parent=11 // pred_check
          %p334 = pneg %p190
        $region26: #{tpu_custom_call.1} parent=11 // pred_check_branch
          %336 = sbr.rel (%p334) target = $region28
        $region27: #{tpu_custom_call.1} parent=11 // pred_region
          _
        $region28: #{tpu_custom_call.1} parent=11 // pred_fallthru
          _
        // Predicated region
        $region29: #{tpu_custom_call.1} parent=11 // pred_check
          %p337 = pneg %p211
        $region30: #{tpu_custom_call.1} parent=11 // pred_check_branch
          %339 = sbr.rel (%p337) target = $region32
        $region31: #{tpu_custom_call.1} parent=11 // pred_region
          %s341 = ssub.s32 256, 256
          %342 = vsyncadd [#allocation11], %s341
          %s343 = sshll.u32 [#allocation12], 4
          %s344 = int_to_ptr.vmem [resolvable:$true] %s343
          %349 = dma.hbm_to_vmem [thread:$0]  %s7, 256, %s344, [#allocation11], 64, 64, 4
        $region32: #{tpu_custom_call.1} parent=11 // pred_fallthru
          _
        // Predicated region
        $region33: #{tpu_custom_call.1} parent=11 // pred_check
          %p350 = pneg %p232
        $region34: #{tpu_custom_call.1} parent=11 // pred_check_branch
          %352 = sbr.rel (%p350) target = $region36
        $region35: #{tpu_custom_call.1} parent=11 // pred_region
          %s354 = ssub.s32 16, 16
          %355 = vsyncadd [#allocation14], %s354
          %s357 = sshll.u32 [#allocation13], 4
          %s358 = int_to_ptr.vmem [resolvable:$true] %s357
          %360 = dma.hbm_to_vmem [thread:$0]  %s8, 16, %s358, [#allocation14]
        $region36: #{tpu_custom_call.1} parent=11 // pred_fallthru
          _
        // Predicated region
        $region37: #{tpu_custom_call.1} parent=11 // pred_check
          %p361 = pneg %p253
        $region38: #{tpu_custom_call.1} parent=11 // pred_check_branch
          %363 = sbr.rel (%p361) target = $region40
        $region39: #{tpu_custom_call.1} parent=11 // pred_region
          _
        $region40: #{tpu_custom_call.1} parent=11 // pred_fallthru
          _
        // Predicated region
        $region41: #{tpu_custom_call.1} parent=11 // pred_check
          %p364 = pneg %p274
        $region42: #{tpu_custom_call.1} parent=11 // pred_check_branch
          %366 = sbr.rel (%p364) target = $region44
        $region43: #{tpu_custom_call.1} parent=11 // pred_region
          _
        $region44: #{tpu_custom_call.1} parent=11 // pred_fallthru
          _
      $region12: #{tpu_custom_call.1} parent=5 // pred_fallthru
        _
      %p367 = scmp.lt.s32.totalorder %s28, 2
      // Predicated region
      $region45: #{tpu_custom_call.1} parent=5 // pred_check
        %p368 = pneg %p367
      $region46: #{tpu_custom_call.1} parent=5 // pred_check_branch
        %370 = sbr.rel (%p368) target = $region48
      $region47: #{tpu_custom_call.1} parent=5 // pred_region
        // Predicated region
        $region49: #{tpu_custom_call.1} parent=47 // pred_check
          %p371 = pneg %p48
        $region50: #{tpu_custom_call.1} parent=47 // pred_check_branch
          %373 = sbr.rel (%p371) target = $region52
        $region51: #{tpu_custom_call.1} parent=47 // pred_region
          %s374 = sand.u32 %s38, 1
          %s375 = scalar_lea.sflag [#allocation5], %s374
          %s376 = sand.u32 %s38, 1
          %s377 = smul.addr %s376, 8
          %s378 = scalar_lea.vmem [#allocation4], %s377
          %s380 = ssub.s32 128, 128
          %381 = vsyncadd %s375, %s380
          %s382 = smul.addr %s28, 128
          %s383 = scalar_lea.hbm %s0, %s382
          %s385 = sshll.u32 %s378, 4
          %s386 = int_to_ptr.vmem [resolvable:$true] %s385
          %388 = dma.hbm_to_vmem [thread:$0]  %s383, 128, %s386, %s375
        $region52: #{tpu_custom_call.1} parent=47 // pred_fallthru
          _
        // Predicated region
        $region53: #{tpu_custom_call.1} parent=47 // pred_check
          %p389 = pneg %p74
        $region54: #{tpu_custom_call.1} parent=47 // pred_check_branch
          %391 = sbr.rel (%p389) target = $region56
        $region55: #{tpu_custom_call.1} parent=47 // pred_region
          %s392 = sand.u32 %s28, 1
          %s393 = scalar_lea.sflag [#allocation8], %s392
          %s394 = sand.u32 %s64, 1
          %s395 = smul.addr %s394, 8
          %s396 = scalar_lea.vmem [#allocation7], %s395
          %s398 = ssub.s32 128, 128
          %399 = vsyncadd %s393, %s398
          %s400 = smul.addr %s28, 128
          %s401 = scalar_lea.hbm %s1, %s400
          %s403 = sshll.u32 %s396, 4
          %s404 = int_to_ptr.vmem [resolvable:$true] %s403
          %406 = dma.hbm_to_vmem [thread:$0]  %s401, 128, %s404, %s393
        $region56: #{tpu_custom_call.1} parent=47 // pred_fallthru
          _
        // Predicated region
        $region57: #{tpu_custom_call.1} parent=47 // pred_check
          %p407 = pneg %p100
        $region58: #{tpu_custom_call.1} parent=47 // pred_check_branch
          %409 = sbr.rel (%p407) target = $region60
        $region59: #{tpu_custom_call.1} parent=47 // pred_region
          %s410 = sand.u32 %s28, 1
          %s411 = scalar_lea.sflag [#allocation8], %s410
          %s412 = sand.u32 %s90, 1
          %s413 = smul.addr %s412, 8
          %s414 = scalar_lea.vmem [#allocation9], %s413
          %s416 = ssub.s32 128, 128
          %417 = vsyncadd %s411, %s416
          %s418 = smul.addr %s28, 128
          %s419 = scalar_lea.hbm %s2, %s418
          %s421 = sshll.u32 %s414, 4
          %s422 = int_to_ptr.vmem [resolvable:$true] %s421
          %424 = dma.hbm_to_vmem [thread:$0]  %s419, 128, %s422, %s411
        $region60: #{tpu_custom_call.1} parent=47 // pred_fallthru
          _
      $region48: #{tpu_custom_call.1} parent=5 // pred_fallthru
        _
      %p425 = scmp.le.s32.totalorder 1, %s28
      %p426 = scmp.lt.s32.totalorder %s28, 3
      %p427 = pnand %p425, %p426
      %p428 = pneg %p427
      // Predicated region
      $region61: #{tpu_custom_call.1} parent=5 // pred_check
        _
      $region62: #{tpu_custom_call.1} parent=5 // pred_check_branch
        %430 = sbr.rel (%p427) target = $region64
      $region63: #{tpu_custom_call.1} parent=5 // pred_region
        %s431 = ssub.s32 %s28, 1
        %s432 = sand.u32 %s41, 1
        %s433 = scalar_lea.sflag [#allocation5], %s432
        %s434 = sand.u32 %s41, 1
        %s435 = smul.addr %s434, 8
        %s436 = scalar_lea.vmem [#allocation4], %s435
        // Predicated region
        $region65: #{tpu_custom_call.1} parent=63 // pred_check
          %p437 = pneg %p54
        $region66: #{tpu_custom_call.1} parent=63 // pred_check_branch
          %439 = sbr.rel (%p437) target = $region68
        $region67: #{tpu_custom_call.1} parent=63 // pred_region
          %440 = dma.done %s433, 128
        $region68: #{tpu_custom_call.1} parent=63 // pred_fallthru
          _
        %s441 = sand.u32 %s33, 1
        %s442 = scalar_lea.sflag [#allocation8], %s441
        %s443 = sand.u32 %s67, 1
        %s444 = smul.addr %s443, 8
        %s445 = scalar_lea.vmem [#allocation7], %s444
        // Predicated region
        $region69: #{tpu_custom_call.1} parent=63 // pred_check
          %p446 = pneg %p80
        $region70: #{tpu_custom_call.1} parent=63 // pred_check_branch
          %448 = sbr.rel (%p446) target = $region72
        $region71: #{tpu_custom_call.1} parent=63 // pred_region
          %449 = dma.done %s442, 128
        $region72: #{tpu_custom_call.1} parent=63 // pred_fallthru
          _
        %s450 = sand.u32 %s33, 1
        %s451 = scalar_lea.sflag [#allocation8], %s450
        %s452 = sand.u32 %s93, 1
        %s453 = smul.addr %s452, 8
        %s454 = scalar_lea.vmem [#allocation9], %s453
        // Predicated region
        $region73: #{tpu_custom_call.1} parent=63 // pred_check
          %p455 = pneg %p106
        $region74: #{tpu_custom_call.1} parent=63 // pred_check_branch
          %457 = sbr.rel (%p455) target = $region76
        $region75: #{tpu_custom_call.1} parent=63 // pred_region
          %458 = dma.done %s451, 128
        $region76: #{tpu_custom_call.1} parent=63 // pred_fallthru
          _
        // Predicated region
        $region77: #{tpu_custom_call.1} parent=63 // pred_check
          %p459 = pneg %p127
        $region78: #{tpu_custom_call.1} parent=63 // pred_check_branch
          %461 = sbr.rel (%p459) target = $region80
        $region79: #{tpu_custom_call.1} parent=63 // pred_region
          %462 = dma.done [#allocation11], 256
        $region80: #{tpu_custom_call.1} parent=63 // pred_fallthru
          _
        // Predicated region
        $region81: #{tpu_custom_call.1} parent=63 // pred_check
          %p463 = pneg %p211
        $region82: #{tpu_custom_call.1} parent=63 // pred_check_branch
          %465 = sbr.rel (%p463) target = $region84
        $region83: #{tpu_custom_call.1} parent=63 // pred_region
          %466 = dma.done [#allocation11], 256
        $region84: #{tpu_custom_call.1} parent=63 // pred_fallthru
          _
        // Predicated region
        $region85: #{tpu_custom_call.1} parent=63 // pred_check
          %p467 = pneg %p232
        $region86: #{tpu_custom_call.1} parent=63 // pred_check_branch
          %469 = sbr.rel (%p467) target = $region88
        $region87: #{tpu_custom_call.1} parent=63 // pred_region
          %470 = dma.done [#allocation14], 16
        $region88: #{tpu_custom_call.1} parent=63 // pred_fallthru
          _
        %s471 = sand.u32 %s41, 1
        %s472 = scalar_lea.sflag [#allocation5], %s471
        %s473 = sand.u32 %s41, 1
        %s474 = smul.addr %s473, 8
        %s475 = scalar_lea.vmem [#allocation4], %s474
        %p476 = pneg %p54
        %p477 = pneg %p51
        %s478 = sand.u32 %s33, 1
        %s479 = scalar_lea.sflag [#allocation8], %s478
        %s480 = sand.u32 %s67, 1
        %s481 = smul.addr %s480, 8
        %s482 = scalar_lea.vmem [#allocation7], %s481
        %p483 = pneg %p80
        %p484 = pneg %p77
        %s485 = sand.u32 %s33, 1
        %s486 = scalar_lea.sflag [#allocation8], %s485
        %s487 = sand.u32 %s93, 1
        %s488 = smul.addr %s487, 8
        %s489 = scalar_lea.vmem [#allocation9], %s488
        %p490 = pneg %p106
        %p491 = pneg %p103
        %p492 = pneg %p127
        %p493 = pneg %p124
        %p494 = pneg %p148
        %p495 = pneg %p145
        %p496 = pneg %p169
        %p497 = pneg %p166
        %p498 = pneg %p190
        %p499 = pneg %p187
        %p500 = pneg %p211
        %p501 = pneg %p208
        %p502 = pneg %p232
        %p503 = pneg %p229
        %p504 = pneg %p253
        %p505 = pneg %p250
        %p506 = pneg %p274
        %p507 = pneg %p271
        %p508 = pneg %p300
        %p509 = pneg %p297
        %s510 = sand.u32 %s287, 1
        %s511 = scalar_lea.sflag [#allocation6], %s510
        %s512 = sand.u32 %s287, 1
        %s513 = smul.addr %s512, 8
        %s514 = scalar_lea.vmem [#allocation15], %s513
        %v516 = vld [vmem:[%s436] sm:$0xff]
        %v517 = vpack.c.bf16 %v516, %v516
        %v518 = vld [vmem:[%s445] sm:$0xff]
        %v519 = vpack.c.bf16 %v518, %v518
        %v520 = vld [vmem:[%s454] sm:$0xff]
        %v521 = vpack.c.bf16 %v520, %v520
        %v522 = vld [vmem:[#allocation10] sm:$0xf]
        %v523 = vld [vmem:[#allocation10 + $0x4] sm:$0xf]
        %v524 = vld [vmem:[#allocation10 + $0x8] sm:$0xf]
        %v525 = vld [vmem:[#allocation10 + $0xc] sm:$0xf]
        %v526 = vld [vmem:[%s4] sm:$0x1]
        %v528 = vlaneseq
        %v529 = vshrl.u32 %v528, 7
        %v530 = vsub.s32 0, %v529
        %v531 = vrot.slane %v526, %v530
        %v537 = vunpack.c.l.b16 %v522
        %v538 = vunpack.c.l.b16 %v523
        %v539 = vunpack.c.l.b16 %v524
        %v540 = vunpack.c.l.b16 %v525
        %v541 = vpack.c.b16 %v538, %v537
        %v542 = vpack.c.b16 %v540, %v539
        %vm545 = vcmask 261120
        %v547 = vsel %vm545, %v517, 0
        %549 = vmatprep.subr.bf16.mxu0 0
        %550 = vmatpush1.bf16.msra.mxu0 %v541
        %551 = vmatprep.subr.bf16.mxu0 0
        %552 = vmatpush1.bf16.msra.mxu0 %v542
        %553 = vmatprep.subr.bf16.mxu0 0
        %554 = vmatpush1.bf16.msra.mxu0 0
        %555 = vmatprep.subr.bf16.mxu0 0
        %556 = vmatpush1.bf16.msra.mxu0 0
        %557 = vmatprep.subr.bf16.mxu0 0
        %558 = vmatpush1.bf16.msra.mxu0 0
        %559 = vmatprep.subr.bf16.mxu0 0
        %560 = vmatpush1.bf16.msra.mxu0 0
        %561 = vmatprep.subr.bf16.mxu0 0
        %562 = vmatpush1.bf16.msra.mxu0 0
        %563 = vmatprep.subr.bf16.mxu0 0
        %564 = vmatpush1.bf16.msra.mxu0 0
        %565 = vmatprep.subr.bf16.mxu0 0
        %566 = vmatpush1.bf16.msra.mxu0 0
        %567 = vmatprep.subr.bf16.mxu0 0
        %568 = vmatpush1.bf16.msra.mxu0 0
        %569 = vmatprep.subr.bf16.mxu0 0
        %570 = vmatpush1.bf16.msra.mxu0 0
        %571 = vmatprep.subr.bf16.mxu0 0
        %572 = vmatpush1.bf16.msra.mxu0 0
        %573 = vmatprep.subr.bf16.mxu0 0
        %574 = vmatpush1.bf16.msra.mxu0 0
        %575 = vmatprep.subr.bf16.mxu0 0
        %576 = vmatpush1.bf16.msra.mxu0 0
        %577 = vmatprep.subr.bf16.mxu0 0
        %578 = vmatpush1.bf16.msra.mxu0 0
        %579 = vmatprep.subr.bf16.mxu0 0
        %580 = vmatpush1.bf16.msra.mxu0 0
        %581 = vmatprep.mubr.bf16.mxu0 0
        %582 = vmatmul.mubr.bf16.gmra.mrb[0].mxu0 %v547
        %v583 = vpop.f32.mrb[0].mxu0
        %v584 = vadd.f32 %v531, %v583
        %v585 = vpop.f32.mrb[0].mxu0
        %v586 = vpop.f32.mrb[0].mxu0
        %v587 = vpop.f32.mrb[0].mxu0
        %588 = vdwg.mxu0
        %v589 = vld [vmem:[%s5] sm:$0xf]
        %v590 = vld [vmem:[%s5 + $0x4] sm:$0xf]
        %v591 = vld [vmem:[%s5 + $0x8] sm:$0xf]
        %v592 = vld [vmem:[%s5 + $0xc] sm:$0xf]
        %v593 = vld [vmem:[%s6] sm:$0x1]
        %v595 = vlaneseq
        %v596 = vshrl.u32 %v595, 7
        %v597 = vsub.s32 0, %v596
        %v598 = vrot.slane %v593, %v597
        %v604 = vunpack.c.l.b16 %v589
        %v605 = vunpack.c.l.b16 %v590
        %v606 = vunpack.c.l.b16 %v591
        %v607 = vunpack.c.l.b16 %v592
        %v608 = vpack.c.b16 %v605, %v604
        %v609 = vpack.c.b16 %v607, %v606
        %v613 = vsel %vm545, %v519, 0
        %615 = vmatprep.subr.bf16.mxu0 0
        %616 = vmatpush1.bf16.msra.mxu0 %v608
        %617 = vmatprep.subr.bf16.mxu0 0
        %618 = vmatpush1.bf16.msra.mxu0 %v609
        %619 = vmatprep.subr.bf16.mxu0 0
        %620 = vmatpush1.bf16.msra.mxu0 0
        %621 = vmatprep.subr.bf16.mxu0 0
        %622 = vmatpush1.bf16.msra.mxu0 0
        %623 = vmatprep.subr.bf16.mxu0 0
        %624 = vmatpush1.bf16.msra.mxu0 0
        %625 = vmatprep.subr.bf16.mxu0 0
        %626 = vmatpush1.bf16.msra.mxu0 0
        %627 = vmatprep.subr.bf16.mxu0 0
        %628 = vmatpush1.bf16.msra.mxu0 0
        %629 = vmatprep.subr.bf16.mxu0 0
        %630 = vmatpush1.bf16.msra.mxu0 0
        %631 = vmatprep.subr.bf16.mxu0 0
        %632 = vmatpush1.bf16.msra.mxu0 0
        %633 = vmatprep.subr.bf16.mxu0 0
        %634 = vmatpush1.bf16.msra.mxu0 0
        %635 = vmatprep.subr.bf16.mxu0 0
        %636 = vmatpush1.bf16.msra.mxu0 0
        %637 = vmatprep.subr.bf16.mxu0 0
        %638 = vmatpush1.bf16.msra.mxu0 0
        %639 = vmatprep.subr.bf16.mxu0 0
        %640 = vmatpush1.bf16.msra.mxu0 0
        %641 = vmatprep.subr.bf16.mxu0 0
        %642 = vmatpush1.bf16.msra.mxu0 0
        %643 = vmatprep.subr.bf16.mxu0 0
        %644 = vmatpush1.bf16.msra.mxu0 0
        %645 = vmatprep.subr.bf16.mxu0 0
        %646 = vmatpush1.bf16.msra.mxu0 0
        %647 = vmatprep.mubr.bf16.mxu0 0
        %648 = vmatmul.mubr.bf16.gmra.mrb[0].mxu0 %v613
        %v649 = vpop.f32.mrb[0].mxu0
        %v650 = vadd.f32 %v598, %v649
        %v651 = vpop.f32.mrb[0].mxu0
        %v652 = vpop.f32.mrb[0].mxu0
        %v653 = vpop.f32.mrb[0].mxu0
        %654 = vdwg.mxu0
        %v655 = vld [vmem:[#allocation12] sm:$0xf]
        %v656 = vld [vmem:[#allocation12 + $0x4] sm:$0xf]
        %v657 = vld [vmem:[#allocation12 + $0x8] sm:$0xf]
        %v658 = vld [vmem:[#allocation12 + $0xc] sm:$0xf]
        %v659 = vld [vmem:[#allocation13] sm:$0x1]
        %v661 = vlaneseq
        %v662 = vshrl.u32 %v661, 7
        %v663 = vsub.s32 0, %v662
        %v664 = vrot.slane %v659, %v663
        %v670 = vunpack.c.l.b16 %v655
        %v671 = vunpack.c.l.b16 %v656
        %v672 = vunpack.c.l.b16 %v657
        %v673 = vunpack.c.l.b16 %v658
        %v674 = vpack.c.b16 %v671, %v670
        %v675 = vpack.c.b16 %v673, %v672
        %v679 = vsel %vm545, %v521, 0
        %681 = vmatprep.subr.bf16.mxu0 0
        %682 = vmatpush1.bf16.msra.mxu0 %v674
        %683 = vmatprep.subr.bf16.mxu0 0
        %684 = vmatpush1.bf16.msra.mxu0 %v675
        %685 = vmatprep.subr.bf16.mxu0 0
        %686 = vmatpush1.bf16.msra.mxu0 0
        %687 = vmatprep.subr.bf16.mxu0 0
        %688 = vmatpush1.bf16.msra.mxu0 0
        %689 = vmatprep.subr.bf16.mxu0 0
        %690 = vmatpush1.bf16.msra.mxu0 0
        %691 = vmatprep.subr.bf16.mxu0 0
        %692 = vmatpush1.bf16.msra.mxu0 0
        %693 = vmatprep.subr.bf16.mxu0 0
        %694 = vmatpush1.bf16.msra.mxu0 0
        %695 = vmatprep.subr.bf16.mxu0 0
        %696 = vmatpush1.bf16.msra.mxu0 0
        %697 = vmatprep.subr.bf16.mxu0 0
        %698 = vmatpush1.bf16.msra.mxu0 0
        %699 = vmatprep.subr.bf16.mxu0 0
        %700 = vmatpush1.bf16.msra.mxu0 0
        %701 = vmatprep.subr.bf16.mxu0 0
        %702 = vmatpush1.bf16.msra.mxu0 0
        %703 = vmatprep.subr.bf16.mxu0 0
        %704 = vmatpush1.bf16.msra.mxu0 0
        %705 = vmatprep.subr.bf16.mxu0 0
        %706 = vmatpush1.bf16.msra.mxu0 0
        %707 = vmatprep.subr.bf16.mxu0 0
        %708 = vmatpush1.bf16.msra.mxu0 0
        %709 = vmatprep.subr.bf16.mxu0 0
        %710 = vmatpush1.bf16.msra.mxu0 0
        %711 = vmatprep.subr.bf16.mxu0 0
        %712 = vmatpush1.bf16.msra.mxu0 0
        %713 = vmatprep.mubr.bf16.mxu0 0
        %714 = vmatmul.mubr.bf16.gmra.mrb[0].mxu0 %v679
        %v715 = vpop.f32.mrb[0].mxu0
        %v716 = vadd.f32 %v664, %v715
        %v717 = vpop.f32.mrb[0].mxu0
        %v718 = vpop.f32.mrb[0].mxu0
        %v719 = vpop.f32.mrb[0].mxu0
        %720 = vdwg.mxu0
        %v721 = vmul.f32 %v584, 0.35355338
        %v722 = vpack.c.bf16 %v721, %v721
        %v723 = vpack.c.bf16 %v650, %v650
        %v724 = vpack.c.bf16 %v716, %v716
        %vm725 = vcmask 64512
        %v727 = vsel %vm725, %v722, 0
        %v730 = vsel %vm725, %v723, 0
        %732 = vmatprep.subr.bf16.mxu0 0
        %733 = vmatpush1.bf16.xpose.msra.mxu0 %v730
        %734 = vmatprep.subr.bf16.mxu0 0
        %735 = vmatpush1.bf16.xpose.msra.mxu0 0
        %736 = vmatprep.subr.bf16.mxu0 0
        %737 = vmatpush1.bf16.xpose.msra.mxu0 0
        %738 = vmatprep.subr.bf16.mxu0 0
        %739 = vmatpush1.bf16.xpose.msra.mxu0 0
        %740 = vmatprep.subr.bf16.mxu0 0
        %741 = vmatpush1.bf16.xpose.msra.mxu0 0
        %742 = vmatprep.subr.bf16.mxu0 0
        %743 = vmatpush1.bf16.xpose.msra.mxu0 0
        %744 = vmatprep.subr.bf16.mxu0 0
        %745 = vmatpush1.bf16.xpose.msra.mxu0 0
        %746 = vmatprep.subr.bf16.mxu0 0
        %747 = vmatpush1.bf16.xpose.msra.mxu0 0
        %748 = vmatprep.subr.bf16.mxu0 0
        %749 = vmatpush1.bf16.xpose.msra.mxu0 0
        %750 = vmatprep.subr.bf16.mxu0 0
        %751 = vmatpush1.bf16.xpose.msra.mxu0 0
        %752 = vmatprep.subr.bf16.mxu0 0
        %753 = vmatpush1.bf16.xpose.msra.mxu0 0
        %754 = vmatprep.subr.bf16.mxu0 0
        %755 = vmatpush1.bf16.xpose.msra.mxu0 0
        %756 = vmatprep.subr.bf16.mxu0 0
        %757 = vmatpush1.bf16.xpose.msra.mxu0 0
        %758 = vmatprep.subr.bf16.mxu0 0
        %759 = vmatpush1.bf16.xpose.msra.mxu0 0
        %760 = vmatprep.subr.bf16.mxu0 0
        %761 = vmatpush1.bf16.xpose.msra.mxu0 0
        %762 = vmatprep.subr.bf16.mxu0 0
        %763 = vmatpush1.bf16.xpose.msra.mxu0 0
        %764 = vmatprep.mubr.bf16.mxu0 0
        %765 = vmatmul.mubr.bf16.gmra.mrb[0].mxu0 %v727
        %v766 = vpop.f32.mrb[0].mxu0
        %v767 = vadd.f32 0.0, %v766
        %v768 = vpop.f32.mrb[0].mxu0
        %v769 = vpop.f32.mrb[0].mxu0
        %v770 = vpop.f32.mrb[0].mxu0
        %771 = vdwg.mxu0
        %v772 = vsel %vm725, %v767, -inf
        %773 = vmax.xlane.f32.xlu0 %v772
        %v774 = vpop.xlane.xlu0 %773
        %v775 = vsub.f32 %v767, %v774
        %v776 = vmul.f32 %v775, 1.442695
        %v777 = vpow.pop %v776
        %v778 = vsel %vm725, %v777, 0.0
        %779 = vadd.xlane.f32.xlu0 %v778
        %v780 = vpop.xlane.xlu0 %779
        %v781 = vpack.c.bf16 %v777, %v777
        %v783 = vsel %vm725, %v781, 0
        %vm785 = vcmask 1043456
        %v787 = vsel %vm785, %v724, 0
        %789 = vmatprep.subr.bf16.mxu0 0
        %790 = vmatpush1.bf16.msra.mxu0 %v787
        %791 = vmatprep.subr.bf16.mxu0 0
        %792 = vmatpush1.bf16.msra.mxu0 0
        %793 = vmatprep.subr.bf16.mxu0 0
        %794 = vmatpush1.bf16.msra.mxu0 0
        %795 = vmatprep.subr.bf16.mxu0 0
        %796 = vmatpush1.bf16.msra.mxu0 0
        %797 = vmatprep.subr.bf16.mxu0 0
        %798 = vmatpush1.bf16.msra.mxu0 0
        %799 = vmatprep.subr.bf16.mxu0 0
        %800 = vmatpush1.bf16.msra.mxu0 0
        %801 = vmatprep.subr.bf16.mxu0 0
        %802 = vmatpush1.bf16.msra.mxu0 0
        %803 = vmatprep.subr.bf16.mxu0 0
        %804 = vmatpush1.bf16.msra.mxu0 0
        %805 = vmatprep.subr.bf16.mxu0 0
        %806 = vmatpush1.bf16.msra.mxu0 0
        %807 = vmatprep.subr.bf16.mxu0 0
        %808 = vmatpush1.bf16.msra.mxu0 0
        %809 = vmatprep.subr.bf16.mxu0 0
        %810 = vmatpush1.bf16.msra.mxu0 0
        %811 = vmatprep.subr.bf16.mxu0 0
        %812 = vmatpush1.bf16.msra.mxu0 0
        %813 = vmatprep.subr.bf16.mxu0 0
        %814 = vmatpush1.bf16.msra.mxu0 0
        %815 = vmatprep.subr.bf16.mxu0 0
        %816 = vmatpush1.bf16.msra.mxu0 0
        %817 = vmatprep.subr.bf16.mxu0 0
        %818 = vmatpush1.bf16.msra.mxu0 0
        %819 = vmatprep.subr.bf16.mxu0 0
        %820 = vmatpush1.bf16.msra.mxu0 0
        %821 = vmatprep.mubr.bf16.mxu0 0
        %822 = vmatmul.mubr.bf16.gmra.mrb[0].mxu0 %v783
        %v823 = vpop.f32.mrb[0].mxu0
        %v824 = vadd.f32 0.0, %v823
        %v825 = vpop.f32.mrb[0].mxu0
        %v826 = vpop.f32.mrb[0].mxu0
        %v827 = vpop.f32.mrb[0].mxu0
        %828 = vdwg.mxu0
        %v829 = vrcp.pop %v780
        %v830 = vmul.f32 %v824, %v829
        %831 = vst.msk [vmem:[#allocation2] sm:$0xff] %vm725, %v830
        %833 = vrot.lane.b32.xlu0 %v722, 120
        %v834 = vpop.permute.xlu0 %833
        %836 = vrot.lane.b32.xlu0 %v723, 120
        %v837 = vpop.permute.xlu0 %836
        %v839 = vsel %vm725, %v834, 0
        %v842 = vsel %vm725, %v837, 0
        %844 = vmatprep.subr.bf16.mxu0 0
        %845 = vmatpush1.bf16.xpose.msra.mxu0 %v842
        %846 = vmatprep.subr.bf16.mxu0 0
        %847 = vmatpush1.bf16.xpose.msra.mxu0 0
        %848 = vmatprep.subr.bf16.mxu0 0
        %849 = vmatpush1.bf16.xpose.msra.mxu0 0
        %850 = vmatprep.subr.bf16.mxu0 0
        %851 = vmatpush1.bf16.xpose.msra.mxu0 0
        %852 = vmatprep.subr.bf16.mxu0 0
        %853 = vmatpush1.bf16.xpose.msra.mxu0 0
        %854 = vmatprep.subr.bf16.mxu0 0
        %855 = vmatpush1.bf16.xpose.msra.mxu0 0
        %856 = vmatprep.subr.bf16.mxu0 0
        %857 = vmatpush1.bf16.xpose.msra.mxu0 0
        %858 = vmatprep.subr.bf16.mxu0 0
        %859 = vmatpush1.bf16.xpose.msra.mxu0 0
        %860 = vmatprep.subr.bf16.mxu0 0
        %861 = vmatpush1.bf16.xpose.msra.mxu0 0
        %862 = vmatprep.subr.bf16.mxu0 0
        %863 = vmatpush1.bf16.xpose.msra.mxu0 0
        %864 = vmatprep.subr.bf16.mxu0 0
        %865 = vmatpush1.bf16.xpose.msra.mxu0 0
        %866 = vmatprep.subr.bf16.mxu0 0
        %867 = vmatpush1.bf16.xpose.msra.mxu0 0
        %868 = vmatprep.subr.bf16.mxu0 0
        %869 = vmatpush1.bf16.xpose.msra.mxu0 0
        %870 = vmatprep.subr.bf16.mxu0 0
        %871 = vmatpush1.bf16.xpose.msra.mxu0 0
        %872 = vmatprep.subr.bf16.mxu0 0
        %873 = vmatpush1.bf16.xpose.msra.mxu0 0
        %874 = vmatprep.subr.bf16.mxu0 0
        %875 = vmatpush1.bf16.xpose.msra.mxu0 0
        %876 = vmatprep.mubr.bf16.mxu0 0
        %877 = vmatmul.mubr.bf16.gmra.mrb[0].mxu0 %v839
        %v878 = vpop.f32.mrb[0].mxu0
        %v879 = vadd.f32 0.0, %v878
        %v880 = vpop.f32.mrb[0].mxu0
        %v881 = vpop.f32.mrb[0].mxu0
        %v882 = vpop.f32.mrb[0].mxu0
        %883 = vdwg.mxu0
        %v884 = vsel %vm725, %v879, -inf
        %885 = vmax.xlane.f32.xlu0 %v884
        %v886 = vpop.xlane.xlu0 %885
        %v887 = vsub.f32 %v879, %v886
        %v888 = vmul.f32 %v887, 1.442695
        %v889 = vpow.pop %v888
        %v890 = vsel %vm725, %v889, 0.0
        %891 = vadd.xlane.f32.xlu0 %v890
        %v892 = vpop.xlane.xlu0 %891
        %v893 = vpack.c.bf16 %v889, %v889
        %895 = vrot.lane.b32.xlu0 %v724, 120
        %v896 = vpop.permute.xlu0 %895
        %v898 = vsel %vm725, %v893, 0
        %v901 = vsel %vm785, %v896, 0
        %903 = vmatprep.subr.bf16.mxu0 0
        %904 = vmatpush1.bf16.msra.mxu0 %v901
        %905 = vmatprep.subr.bf16.mxu0 0
        %906 = vmatpush1.bf16.msra.mxu0 0
        %907 = vmatprep.subr.bf16.mxu0 0
        %908 = vmatpush1.bf16.msra.mxu0 0
        %909 = vmatprep.subr.bf16.mxu0 0
        %910 = vmatpush1.bf16.msra.mxu0 0
        %911 = vmatprep.subr.bf16.mxu0 0
        %912 = vmatpush1.bf16.msra.mxu0 0
        %913 = vmatprep.subr.bf16.mxu0 0
        %914 = vmatpush1.bf16.msra.mxu0 0
        %915 = vmatprep.subr.bf16.mxu0 0
        %916 = vmatpush1.bf16.msra.mxu0 0
        %917 = vmatprep.subr.bf16.mxu0 0
        %918 = vmatpush1.bf16.msra.mxu0 0
        %919 = vmatprep.subr.bf16.mxu0 0
        %920 = vmatpush1.bf16.msra.mxu0 0
        %921 = vmatprep.subr.bf16.mxu0 0
        %922 = vmatpush1.bf16.msra.mxu0 0
        %923 = vmatprep.subr.bf16.mxu0 0
        %924 = vmatpush1.bf16.msra.mxu0 0
        %925 = vmatprep.subr.bf16.mxu0 0
        %926 = vmatpush1.bf16.msra.mxu0 0
        %927 = vmatprep.subr.bf16.mxu0 0
        %928 = vmatpush1.bf16.msra.mxu0 0
        %929 = vmatprep.subr.bf16.mxu0 0
        %930 = vmatpush1.bf16.msra.mxu0 0
        %931 = vmatprep.subr.bf16.mxu0 0
        %932 = vmatpush1.bf16.msra.mxu0 0
        %933 = vmatprep.subr.bf16.mxu0 0
        %934 = vmatpush1.bf16.msra.mxu0 0
        %935 = vmatprep.mubr.bf16.mxu0 0
        %936 = vmatmul.mubr.bf16.gmra.mrb[0].mxu0 %v898
        %v937 = vpop.f32.mrb[0].mxu0
        %v938 = vadd.f32 0.0, %v937
        %v939 = vpop.f32.mrb[0].mxu0
        %v940 = vpop.f32.mrb[0].mxu0
        %v941 = vpop.f32.mrb[0].mxu0
        %942 = vdwg.mxu0
        %v943 = vrcp.pop %v892
        %v944 = vmul.f32 %v938, %v943
        %945 = vst.msk [vmem:[#allocation2 + $0x8] sm:$0xff] %vm725, %v944
        %946 = vrot.lane.b32.xlu0 %v722, 112
        %v947 = vpop.permute.xlu0 %946
        %948 = vrot.lane.b32.xlu0 %v723, 112
        %v949 = vpop.permute.xlu0 %948
        %v951 = vsel %vm725, %v947, 0
        %v954 = vsel %vm725, %v949, 0
        %956 = vmatprep.subr.bf16.mxu0 0
        %957 = vmatpush1.bf16.xpose.msra.mxu0 %v954
        %958 = vmatprep.subr.bf16.mxu0 0
        %959 = vmatpush1.bf16.xpose.msra.mxu0 0
        %960 = vmatprep.subr.bf16.mxu0 0
        %961 = vmatpush1.bf16.xpose.msra.mxu0 0
        %962 = vmatprep.subr.bf16.mxu0 0
        %963 = vmatpush1.bf16.xpose.msra.mxu0 0
        %964 = vmatprep.subr.bf16.mxu0 0
        %965 = vmatpush1.bf16.xpose.msra.mxu0 0
        %966 = vmatprep.subr.bf16.mxu0 0
        %967 = vmatpush1.bf16.xpose.msra.mxu0 0
        %968 = vmatprep.subr.bf16.mxu0 0
        %969 = vmatpush1.bf16.xpose.msra.mxu0 0
        %970 = vmatprep.subr.bf16.mxu0 0
        %971 = vmatpush1.bf16.xpose.msra.mxu0 0
        %972 = vmatprep.subr.bf16.mxu0 0
        %973 = vmatpush1.bf16.xpose.msra.mxu0 0
        %974 = vmatprep.subr.bf16.mxu0 0
        %975 = vmatpush1.bf16.xpose.msra.mxu0 0
        %976 = vmatprep.subr.bf16.mxu0 0
        %977 = vmatpush1.bf16.xpose.msra.mxu0 0
        %978 = vmatprep.subr.bf16.mxu0 0
        %979 = vmatpush1.bf16.xpose.msra.mxu0 0
        %980 = vmatprep.subr.bf16.mxu0 0
        %981 = vmatpush1.bf16.xpose.msra.mxu0 0
        %982 = vmatprep.subr.bf16.mxu0 0
        %983 = vmatpush1.bf16.xpose.msra.mxu0 0
        %984 = vmatprep.subr.bf16.mxu0 0
        %985 = vmatpush1.bf16.xpose.msra.mxu0 0
        %986 = vmatprep.subr.bf16.mxu0 0
        %987 = vmatpush1.bf16.xpose.msra.mxu0 0
        %988 = vmatprep.mubr.bf16.mxu0 0
        %989 = vmatmul.mubr.bf16.gmra.mrb[0].mxu0 %v951
        %v990 = vpop.f32.mrb[0].mxu0
        %v991 = vadd.f32 0.0, %v990
        %v992 = vpop.f32.mrb[0].mxu0
        %v993 = vpop.f32.mrb[0].mxu0
        %v994 = vpop.f32.mrb[0].mxu0
        %995 = vdwg.mxu0
        %v996 = vsel %vm725, %v991, -inf
        %997 = vmax.xlane.f32.xlu0 %v996
        %v998 = vpop.xlane.xlu0 %997
        %v999 = vsub.f32 %v991, %v998
        %v1000 = vmul.f32 %v999, 1.442695
        %v1001 = vpow.pop %v1000
        %v1002 = vsel %vm725, %v1001, 0.0
        %1003 = vadd.xlane.f32.xlu0 %v1002
        %v1004 = vpop.xlane.xlu0 %1003
        %v1005 = vpack.c.bf16 %v1001, %v1001
        %1006 = vrot.lane.b32.xlu0 %v724, 112
        %v1007 = vpop.permute.xlu0 %1006
        %v1009 = vsel %vm725, %v1005, 0
        %v1012 = vsel %vm785, %v1007, 0
        %1014 = vmatprep.subr.bf16.mxu0 0
        %1015 = vmatpush1.bf16.msra.mxu0 %v1012
        %1016 = vmatprep.subr.bf16.mxu0 0
        %1017 = vmatpush1.bf16.msra.mxu0 0
        %1018 = vmatprep.subr.bf16.mxu0 0
        %1019 = vmatpush1.bf16.msra.mxu0 0
        %1020 = vmatprep.subr.bf16.mxu0 0
        %1021 = vmatpush1.bf16.msra.mxu0 0
        %1022 = vmatprep.subr.bf16.mxu0 0
        %1023 = vmatpush1.bf16.msra.mxu0 0
        %1024 = vmatprep.subr.bf16.mxu0 0
        %1025 = vmatpush1.bf16.msra.mxu0 0
        %1026 = vmatprep.subr.bf16.mxu0 0
        %1027 = vmatpush1.bf16.msra.mxu0 0
        %1028 = vmatprep.subr.bf16.mxu0 0
        %1029 = vmatpush1.bf16.msra.mxu0 0
        %1030 = vmatprep.subr.bf16.mxu0 0
        %1031 = vmatpush1.bf16.msra.mxu0 0
        %1032 = vmatprep.subr.bf16.mxu0 0
        %1033 = vmatpush1.bf16.msra.mxu0 0
        %1034 = vmatprep.subr.bf16.mxu0 0
        %1035 = vmatpush1.bf16.msra.mxu0 0
        %1036 = vmatprep.subr.bf16.mxu0 0
        %1037 = vmatpush1.bf16.msra.mxu0 0
        %1038 = vmatprep.subr.bf16.mxu0 0
        %1039 = vmatpush1.bf16.msra.mxu0 0
        %1040 = vmatprep.subr.bf16.mxu0 0
        %1041 = vmatpush1.bf16.msra.mxu0 0
        %1042 = vmatprep.subr.bf16.mxu0 0
        %1043 = vmatpush1.bf16.msra.mxu0 0
        %1044 = vmatprep.subr.bf16.mxu0 0
        %1045 = vmatpush1.bf16.msra.mxu0 0
        %1046 = vmatprep.mubr.bf16.mxu0 0
        %1047 = vmatmul.mubr.bf16.gmra.mrb[0].mxu0 %v1009
        %v1048 = vpop.f32.mrb[0].mxu0
        %v1049 = vadd.f32 0.0, %v1048
        %v1050 = vpop.f32.mrb[0].mxu0
        %v1051 = vpop.f32.mrb[0].mxu0
        %v1052 = vpop.f32.mrb[0].mxu0
        %1053 = vdwg.mxu0
        %v1054 = vrcp.pop %v1004
        %v1055 = vmul.f32 %v1049, %v1054
        %1056 = vst.msk [vmem:[#allocation2 + $0x10] sm:$0xff] %vm725, %v1055
        %1057 = vrot.lane.b32.xlu0 %v722, 104
        %v1058 = vpop.permute.xlu0 %1057
        %1059 = vrot.lane.b32.xlu0 %v723, 104
        %v1060 = vpop.permute.xlu0 %1059
        %v1062 = vsel %vm725, %v1058, 0
        %v1065 = vsel %vm725, %v1060, 0
        %1067 = vmatprep.subr.bf16.mxu0 0
        %1068 = vmatpush1.bf16.xpose.msra.mxu0 %v1065
        %1069 = vmatprep.subr.bf16.mxu0 0
        %1070 = vmatpush1.bf16.xpose.msra.mxu0 0
        %1071 = vmatprep.subr.bf16.mxu0 0
        %1072 = vmatpush1.bf16.xpose.msra.mxu0 0
        %1073 = vmatprep.subr.bf16.mxu0 0
        %1074 = vmatpush1.bf16.xpose.msra.mxu0 0
        %1075 = vmatprep.subr.bf16.mxu0 0
        %1076 = vmatpush1.bf16.xpose.msra.mxu0 0
        %1077 = vmatprep.subr.bf16.mxu0 0
        %1078 = vmatpush1.bf16.xpose.msra.mxu0 0
        %1079 = vmatprep.subr.bf16.mxu0 0
        %1080 = vmatpush1.bf16.xpose.msra.mxu0 0
        %1081 = vmatprep.subr.bf16.mxu0 0
        %1082 = vmatpush1.bf16.xpose.msra.mxu0 0
        %1083 = vmatprep.subr.bf16.mxu0 0
        %1084 = vmatpush1.bf16.xpose.msra.mxu0 0
        %1085 = vmatprep.subr.bf16.mxu0 0
        %1086 = vmatpush1.bf16.xpose.msra.mxu0 0
        %1087 = vmatprep.subr.bf16.mxu0 0
        %1088 = vmatpush1.bf16.xpose.msra.mxu0 0
        %1089 = vmatprep.subr.bf16.mxu0 0
        %1090 = vmatpush1.bf16.xpose.msra.mxu0 0
        %1091 = vmatprep.subr.bf16.mxu0 0
        %1092 = vmatpush1.bf16.xpose.msra.mxu0 0
        %1093 = vmatprep.subr.bf16.mxu0 0
        %1094 = vmatpush1.bf16.xpose.msra.mxu0 0
        %1095 = vmatprep.subr.bf16.mxu0 0
        %1096 = vmatpush1.bf16.xpose.msra.mxu0 0
        %1097 = vmatprep.subr.bf16.mxu0 0
        %1098 = vmatpush1.bf16.xpose.msra.mxu0 0
        %1099 = vmatprep.mubr.bf16.mxu0 0
        %1100 = vmatmul.mubr.bf16.gmra.mrb[0].mxu0 %v1062
        %v1101 = vpop.f32.mrb[0].mxu0
        %v1102 = vadd.f32 0.0, %v1101
        %v1103 = vpop.f32.mrb[0].mxu0
        %v1104 = vpop.f32.mrb[0].mxu0
        %v1105 = vpop.f32.mrb[0].mxu0
        %1106 = vdwg.mxu0
        %v1107 = vsel %vm725, %v1102, -inf
        %1108 = vmax.xlane.f32.xlu0 %v1107
        %v1109 = vpop.xlane.xlu0 %1108
        %v1110 = vsub.f32 %v1102, %v1109
        %v1111 = vmul.f32 %v1110, 1.442695
        %v1112 = vpow.pop %v1111
        %v1113 = vsel %vm725, %v1112, 0.0
        %1114 = vadd.xlane.f32.xlu0 %v1113
        %v1115 = vpop.xlane.xlu0 %1114
        %v1116 = vpack.c.bf16 %v1112, %v1112
        %1117 = vrot.lane.b32.xlu0 %v724, 104
        %v1118 = vpop.permute.xlu0 %1117
        %v1120 = vsel %vm725, %v1116, 0
        %v1123 = vsel %vm785, %v1118, 0
        %1125 = vmatprep.subr.bf16.mxu0 0
        %1126 = vmatpush1.bf16.msra.mxu0 %v1123
        %1127 = vmatprep.subr.bf16.mxu0 0
        %1128 = vmatpush1.bf16.msra.mxu0 0
        %1129 = vmatprep.subr.bf16.mxu0 0
        %1130 = vmatpush1.bf16.msra.mxu0 0
        %1131 = vmatprep.subr.bf16.mxu0 0
        %1132 = vmatpush1.bf16.msra.mxu0 0
        %1133 = vmatprep.subr.bf16.mxu0 0
        %1134 = vmatpush1.bf16.msra.mxu0 0
        %1135 = vmatprep.subr.bf16.mxu0 0
        %1136 = vmatpush1.bf16.msra.mxu0 0
        %1137 = vmatprep.subr.bf16.mxu0 0
        %1138 = vmatpush1.bf16.msra.mxu0 0
        %1139 = vmatprep.subr.bf16.mxu0 0
        %1140 = vmatpush1.bf16.msra.mxu0 0
        %1141 = vmatprep.subr.bf16.mxu0 0
        %1142 = vmatpush1.bf16.msra.mxu0 0
        %1143 = vmatprep.subr.bf16.mxu0 0
        %1144 = vmatpush1.bf16.msra.mxu0 0
        %1145 = vmatprep.subr.bf16.mxu0 0
        %1146 = vmatpush1.bf16.msra.mxu0 0
        %1147 = vmatprep.subr.bf16.mxu0 0
        %1148 = vmatpush1.bf16.msra.mxu0 0
        %1149 = vmatprep.subr.bf16.mxu0 0
        %1150 = vmatpush1.bf16.msra.mxu0 0
        %1151 = vmatprep.subr.bf16.mxu0 0
        %1152 = vmatpush1.bf16.msra.mxu0 0
        %1153 = vmatprep.subr.bf16.mxu0 0
        %1154 = vmatpush1.bf16.msra.mxu0 0
        %1155 = vmatprep.subr.bf16.mxu0 0
        %1156 = vmatpush1.bf16.msra.mxu0 0
        %1157 = vmatprep.mubr.bf16.mxu0 0
        %1158 = vmatmul.mubr.bf16.gmra.mrb[0].mxu0 %v1120
        %v1159 = vpop.f32.mrb[0].mxu0
        %v1160 = vadd.f32 0.0, %v1159
        %v1161 = vpop.f32.mrb[0].mxu0
        %v1162 = vpop.f32.mrb[0].mxu0
        %v1163 = vpop.f32.mrb[0].mxu0
        %1164 = vdwg.mxu0
        %v1165 = vrcp.pop %v1115
        %v1166 = vmul.f32 %v1160, %v1165
        %1167 = vst.msk [vmem:[#allocation2 + $0x18] sm:$0xff] %vm725, %v1166
        %1168 = vst.msk [vmem:[#allocation3] sm:$0xff] %vm545, 0.0
        %v1169 = vld [vmem:[#allocation2] ss:$4 sm:$0xff]
        %v1170 = vld [vmem:[#allocation3] sm:$0xff]
        %v1171 = vpack.c.bf16 %v1169, %v1169
        %v1172 = vld [vmem:[%s9] sm:$0xf]
        %v1174 = vsel %vm725, %v1171, 0
        %v1177 = vsel %vm785, %v1172, 0
        %1179 = vmatprep.subr.bf16.mxu0 0
        %1180 = vmatpush1.bf16.msra.mxu0 %v1177
        %1181 = vmatprep.subr.bf16.mxu0 0
        %1182 = vmatpush1.bf16.msra.mxu0 0
        %1183 = vmatprep.subr.bf16.mxu0 0
        %1184 = vmatpush1.bf16.msra.mxu0 0
        %1185 = vmatprep.subr.bf16.mxu0 0
        %1186 = vmatpush1.bf16.msra.mxu0 0
        %1187 = vmatprep.subr.bf16.mxu0 0
        %1188 = vmatpush1.bf16.msra.mxu0 0
        %1189 = vmatprep.subr.bf16.mxu0 0
        %1190 = vmatpush1.bf16.msra.mxu0 0
        %1191 = vmatprep.subr.bf16.mxu0 0
        %1192 = vmatpush1.bf16.msra.mxu0 0
        %1193 = vmatprep.subr.bf16.mxu0 0
        %1194 = vmatpush1.bf16.msra.mxu0 0
        %1195 = vmatprep.subr.bf16.mxu0 0
        %1196 = vmatpush1.bf16.msra.mxu0 0
        %1197 = vmatprep.subr.bf16.mxu0 0
        %1198 = vmatpush1.bf16.msra.mxu0 0
        %1199 = vmatprep.subr.bf16.mxu0 0
        %1200 = vmatpush1.bf16.msra.mxu0 0
        %1201 = vmatprep.subr.bf16.mxu0 0
        %1202 = vmatpush1.bf16.msra.mxu0 0
        %1203 = vmatprep.subr.bf16.mxu0 0
        %1204 = vmatpush1.bf16.msra.mxu0 0
        %1205 = vmatprep.subr.bf16.mxu0 0
        %1206 = vmatpush1.bf16.msra.mxu0 0
        %1207 = vmatprep.subr.bf16.mxu0 0
        %1208 = vmatpush1.bf16.msra.mxu0 0
        %1209 = vmatprep.subr.bf16.mxu0 0
        %1210 = vmatpush1.bf16.msra.mxu0 0
        %1211 = vmatprep.mubr.bf16.mxu0 0
        %1212 = vmatmul.mubr.bf16.gmra.mrb[0].mxu0 %v1174
        %v1213 = vpop.f32.mrb[0].mxu0
        %v1214 = vadd.f32 0.0, %v1213
        %v1215 = vpop.f32.mrb[0].mxu0
        %v1216 = vpop.f32.mrb[0].mxu0
        %v1217 = vpop.f32.mrb[0].mxu0
        %1218 = vdwg.mxu0
        %v1219 = vadd.f32 %v1170, %v1214
        %1220 = vst.msk [vmem:[#allocation3] sm:$0xff] %vm545, %v1219
        %s1221 = scalar_lea.vmem [#allocation2], 1
        %v1222 = vld [vmem:[%s1221] ss:$4 sm:$0xff]
        %v1223 = vld [vmem:[#allocation3] sm:$0xff]
        %v1224 = vpack.c.bf16 %v1222, %v1222
        %v1225 = vld [vmem:[%s9 + $0x4] sm:$0xf]
        %v1227 = vsel %vm725, %v1224, 0
        %v1230 = vsel %vm785, %v1225, 0
        %1232 = vmatprep.subr.bf16.mxu0 0
        %1233 = vmatpush1.bf16.msra.mxu0 %v1230
        %1234 = vmatprep.subr.bf16.mxu0 0
        %1235 = vmatpush1.bf16.msra.mxu0 0
        %1236 = vmatprep.subr.bf16.mxu0 0
        %1237 = vmatpush1.bf16.msra.mxu0 0
        %1238 = vmatprep.subr.bf16.mxu0 0
        %1239 = vmatpush1.bf16.msra.mxu0 0
        %1240 = vmatprep.subr.bf16.mxu0 0
        %1241 = vmatpush1.bf16.msra.mxu0 0
        %1242 = vmatprep.subr.bf16.mxu0 0
        %1243 = vmatpush1.bf16.msra.mxu0 0
        %1244 = vmatprep.subr.bf16.mxu0 0
        %1245 = vmatpush1.bf16.msra.mxu0 0
        %1246 = vmatprep.subr.bf16.mxu0 0
        %1247 = vmatpush1.bf16.msra.mxu0 0
        %1248 = vmatprep.subr.bf16.mxu0 0
        %1249 = vmatpush1.bf16.msra.mxu0 0
        %1250 = vmatprep.subr.bf16.mxu0 0
        %1251 = vmatpush1.bf16.msra.mxu0 0
        %1252 = vmatprep.subr.bf16.mxu0 0
        %1253 = vmatpush1.bf16.msra.mxu0 0
        %1254 = vmatprep.subr.bf16.mxu0 0
        %1255 = vmatpush1.bf16.msra.mxu0 0
        %1256 = vmatprep.subr.bf16.mxu0 0
        %1257 = vmatpush1.bf16.msra.mxu0 0
        %1258 = vmatprep.subr.bf16.mxu0 0
        %1259 = vmatpush1.bf16.msra.mxu0 0
        %1260 = vmatprep.subr.bf16.mxu0 0
        %1261 = vmatpush1.bf16.msra.mxu0 0
        %1262 = vmatprep.subr.bf16.mxu0 0
        %1263 = vmatpush1.bf16.msra.mxu0 0
        %1264 = vmatprep.mubr.bf16.mxu0 0
        %1265 = vmatmul.mubr.bf16.gmra.mrb[0].mxu0 %v1227
        %v1266 = vpop.f32.mrb[0].mxu0
        %v1267 = vadd.f32 0.0, %v1266
        %v1268 = vpop.f32.mrb[0].mxu0
        %v1269 = vpop.f32.mrb[0].mxu0
        %v1270 = vpop.f32.mrb[0].mxu0
        %1271 = vdwg.mxu0
        %v1272 = vadd.f32 %v1223, %v1267
        %1273 = vst.msk [vmem:[#allocation3] sm:$0xff] %vm545, %v1272
        %s1274 = scalar_lea.vmem [#allocation2], 2
        %v1275 = vld [vmem:[%s1274] ss:$4 sm:$0xff]
        %v1276 = vld [vmem:[#allocation3] sm:$0xff]
        %v1277 = vpack.c.bf16 %v1275, %v1275
        %v1278 = vld [vmem:[%s9 + $0x8] sm:$0xf]
        %v1280 = vsel %vm725, %v1277, 0
        %v1283 = vsel %vm785, %v1278, 0
        %1285 = vmatprep.subr.bf16.mxu0 0
        %1286 = vmatpush1.bf16.msra.mxu0 %v1283
        %1287 = vmatprep.subr.bf16.mxu0 0
        %1288 = vmatpush1.bf16.msra.mxu0 0
        %1289 = vmatprep.subr.bf16.mxu0 0
        %1290 = vmatpush1.bf16.msra.mxu0 0
        %1291 = vmatprep.subr.bf16.mxu0 0
        %1292 = vmatpush1.bf16.msra.mxu0 0
        %1293 = vmatprep.subr.bf16.mxu0 0
        %1294 = vmatpush1.bf16.msra.mxu0 0
        %1295 = vmatprep.subr.bf16.mxu0 0
        %1296 = vmatpush1.bf16.msra.mxu0 0
        %1297 = vmatprep.subr.bf16.mxu0 0
        %1298 = vmatpush1.bf16.msra.mxu0 0
        %1299 = vmatprep.subr.bf16.mxu0 0
        %1300 = vmatpush1.bf16.msra.mxu0 0
        %1301 = vmatprep.subr.bf16.mxu0 0
        %1302 = vmatpush1.bf16.msra.mxu0 0
        %1303 = vmatprep.subr.bf16.mxu0 0
        %1304 = vmatpush1.bf16.msra.mxu0 0
        %1305 = vmatprep.subr.bf16.mxu0 0
        %1306 = vmatpush1.bf16.msra.mxu0 0
        %1307 = vmatprep.subr.bf16.mxu0 0
        %1308 = vmatpush1.bf16.msra.mxu0 0
        %1309 = vmatprep.subr.bf16.mxu0 0
        %1310 = vmatpush1.bf16.msra.mxu0 0
        %1311 = vmatprep.subr.bf16.mxu0 0
        %1312 = vmatpush1.bf16.msra.mxu0 0
        %1313 = vmatprep.subr.bf16.mxu0 0
        %1314 = vmatpush1.bf16.msra.mxu0 0
        %1315 = vmatprep.subr.bf16.mxu0 0
        %1316 = vmatpush1.bf16.msra.mxu0 0
        %1317 = vmatprep.mubr.bf16.mxu0 0
        %1318 = vmatmul.mubr.bf16.gmra.mrb[0].mxu0 %v1280
        %v1319 = vpop.f32.mrb[0].mxu0
        %v1320 = vadd.f32 0.0, %v1319
        %v1321 = vpop.f32.mrb[0].mxu0
        %v1322 = vpop.f32.mrb[0].mxu0
        %v1323 = vpop.f32.mrb[0].mxu0
        %1324 = vdwg.mxu0
        %v1325 = vadd.f32 %v1276, %v1320
        %1326 = vst.msk [vmem:[#allocation3] sm:$0xff] %vm545, %v1325
        %s1327 = scalar_lea.vmem [#allocation2], 3
        %v1328 = vld [vmem:[%s1327] ss:$4 sm:$0xff]
        %v1329 = vld [vmem:[#allocation3] sm:$0xff]
        %v1330 = vpack.c.bf16 %v1328, %v1328
        %v1331 = vld [vmem:[%s9 + $0xc] sm:$0xf]
        %v1333 = vsel %vm725, %v1330, 0
        %v1336 = vsel %vm785, %v1331, 0
        %1338 = vmatprep.subr.bf16.mxu0 0
        %1339 = vmatpush1.bf16.msra.mxu0 %v1336
        %1340 = vmatprep.subr.bf16.mxu0 0
        %1341 = vmatpush1.bf16.msra.mxu0 0
        %1342 = vmatprep.subr.bf16.mxu0 0
        %1343 = vmatpush1.bf16.msra.mxu0 0
        %1344 = vmatprep.subr.bf16.mxu0 0
        %1345 = vmatpush1.bf16.msra.mxu0 0
        %1346 = vmatprep.subr.bf16.mxu0 0
        %1347 = vmatpush1.bf16.msra.mxu0 0
        %1348 = vmatprep.subr.bf16.mxu0 0
        %1349 = vmatpush1.bf16.msra.mxu0 0
        %1350 = vmatprep.subr.bf16.mxu0 0
        %1351 = vmatpush1.bf16.msra.mxu0 0
        %1352 = vmatprep.subr.bf16.mxu0 0
        %1353 = vmatpush1.bf16.msra.mxu0 0
        %1354 = vmatprep.subr.bf16.mxu0 0
        %1355 = vmatpush1.bf16.msra.mxu0 0
        %1356 = vmatprep.subr.bf16.mxu0 0
        %1357 = vmatpush1.bf16.msra.mxu0 0
        %1358 = vmatprep.subr.bf16.mxu0 0
        %1359 = vmatpush1.bf16.msra.mxu0 0
        %1360 = vmatprep.subr.bf16.mxu0 0
        %1361 = vmatpush1.bf16.msra.mxu0 0
        %1362 = vmatprep.subr.bf16.mxu0 0
        %1363 = vmatpush1.bf16.msra.mxu0 0
        %1364 = vmatprep.subr.bf16.mxu0 0
        %1365 = vmatpush1.bf16.msra.mxu0 0
        %1366 = vmatprep.subr.bf16.mxu0 0
        %1367 = vmatpush1.bf16.msra.mxu0 0
        %1368 = vmatprep.subr.bf16.mxu0 0
        %1369 = vmatpush1.bf16.msra.mxu0 0
        %1370 = vmatprep.mubr.bf16.mxu0 0
        %1371 = vmatmul.mubr.bf16.gmra.mrb[0].mxu0 %v1333
        %v1372 = vpop.f32.mrb[0].mxu0
        %v1373 = vadd.f32 0.0, %v1372
        %v1374 = vpop.f32.mrb[0].mxu0
        %v1375 = vpop.f32.mrb[0].mxu0
        %v1376 = vpop.f32.mrb[0].mxu0
        %1377 = vdwg.mxu0
        %v1378 = vadd.f32 %v1329, %v1373
        %1379 = vst.msk [vmem:[#allocation3] sm:$0xff] %vm545, %v1378
        %v1380 = vld [vmem:[#allocation3] sm:$0xff]
        %v1381 = vld [vmem:[%s10] sm:$0x1]
        %v1383 = vlaneseq
        %v1384 = vshrl.u32 %v1383, 7
        %v1385 = vsub.s32 0, %v1384
        %v1386 = vrot.slane %v1381, %v1385
        %v1388 = vadd.f32 %v1380, %v1386
        %1389 = vst.msk [vmem:[%s514] sm:$0xff] %vm545, %v1388
        %s1390 = sand.u32 %s287, 1
        %s1391 = scalar_lea.sflag [#allocation6], %s1390
        %s1392 = sand.u32 %s287, 1
        %s1393 = smul.addr %s1392, 8
        %s1394 = scalar_lea.vmem [#allocation15], %s1393
        // Predicated region
        $region89: #{tpu_custom_call.1} parent=63 // pred_check
          %p1395 = pneg %p297
        $region90: #{tpu_custom_call.1} parent=63 // pred_check_branch
          %1397 = sbr.rel (%p1395) target = $region92
        $region91: #{tpu_custom_call.1} parent=63 // pred_region
          %s1399 = ssub.s32 128, 128
          %1400 = vsyncadd %s1391, %s1399
          %s1401 = smul.addr %s33, 128
          %s1402 = scalar_lea.hbm %s11, %s1401
          %s1404 = sshll.u32 %s1394, 4
          %s1405 = int_to_ptr.vmem [resolvable:$true] %s1404
          %1407 = dma.vmem_to_hbm [thread:$0]  %s1405, 128, %s1402, %s1391
        $region92: #{tpu_custom_call.1} parent=63 // pred_fallthru
          _
      $region64: #{tpu_custom_call.1} parent=5 // pred_fallthru
        _
      %p1408 = scmp.le.s32.totalorder 2, %s28
      // Predicated region
      $region93: #{tpu_custom_call.1} parent=5 // pred_check
        %p1409 = pneg %p1408
      $region94: #{tpu_custom_call.1} parent=5 // pred_check_branch
        %1411 = sbr.rel (%p1409) target = $region96
      $region95: #{tpu_custom_call.1} parent=5 // pred_region
        %s1412 = ssub.s32 %s28, 2
        // Predicated region
        $region97: #{tpu_custom_call.1} parent=95 // pred_check
          %p1413 = pneg %p303
        $region98: #{tpu_custom_call.1} parent=95 // pred_check_branch
          %1415 = sbr.rel (%p1413) target = $region100
        $region99: #{tpu_custom_call.1} parent=95 // pred_region
          %s1416 = sand.u32 %s288, 1
          %s1417 = scalar_lea.sflag [#allocation6], %s1416
          %s1418 = sand.u32 %s288, 1
          %s1419 = smul.addr %s1418, 8
          %s1420 = scalar_lea.vmem [#allocation15], %s1419
          %1421 = dma.done %s1417, 128
        $region100: #{tpu_custom_call.1} parent=95 // pred_fallthru
          _
      $region96: #{tpu_custom_call.1} parent=5 // pred_fallthru
        _
    $region6: #{tpu_custom_call.1} parent=1 // loop_footer
      %s32 = sadd.s32 1, %s28
    $region7: #{tpu_custom_call.1} parent=1 // loop_footer_branch
      %27 = sbr.rel target = $region3
    $region8: #{tpu_custom_call.1} parent=1 // loop_exit
      _
    %1422 = vsyncpa [#allocation5], 1
    %s1423 = scalar_lea.sflag [#allocation5], 1
    %1424 = vsyncpa %s1423, 1
    %1425 = vsyncpa [#allocation8], 1
    %s1426 = scalar_lea.sflag [#allocation8], 1
    %1427 = vsyncpa %s1426, 1
    %1428 = vsyncpa [#allocation11], 1
    %1429 = vsyncpa [#allocation14], 1
    %1430 = vsyncpa [#allocation6], 1
    %s1431 = scalar_lea.sflag [#allocation6], 1
    %1432 = vsyncpa %s1431, 1

</llo_original>
